<compile_context>
chip_gen: v5e
topology: v5e:2x2
jax: 0.10.0
libtpu: 0.0.40
codegen_flags: <defaults>
</compile_context>

<pallas_src>
import functools

import jax
import jax.numpy as jnp
from jax.experimental import pallas as pl
from jax.experimental.pallas import tpu as pltpu

_LANE = 128     # vreg lane width (last axis)
_SUBLANE = 8    # vreg sublane width (second-to-last axis, f32)


def _round_up(n, m):
    return ((n + m - 1) // m) * m


def _prelu(x, a):
    # torch.nn.PReLU with a single shared slope `a` (init 0.25)
    return jnp.where(x >= 0, x, a * x)


def _resident_spec(shape):
    """Constant-index-map (resident) spec; single-buffered when supported."""
    idx = lambda i: (0, 0)
    if hasattr(pl, "Buffered"):
        try:
            return pl.BlockSpec(shape, idx, pipeline_mode=pl.Buffered(1))
        except TypeError:  # older API without pipeline_mode kwarg
            pass
    return pl.BlockSpec(shape, idx)


def preprocess_kernel(alpha_ref,                      # SMEM (3,) PReLU slopes
                      x_ref,                          # VMEM (tm, Cp)  f32
                      w1_ref, b1_ref,                 # VMEM (Cp, Hp) bf16, (1, Hp) f32
                      w2_ref, b2_ref,                 # VMEM (Hp, Hp) bf16, (1, Hp) f32
                      w3_ref, b3_ref,                 # VMEM (Hp, Op) bf16, (1, Op) f32
                      o_ref):                         # VMEM (tm, Op)  f32
    bf16 = jnp.bfloat16
    x = x_ref[...]

    h = jnp.dot(x.astype(bf16), w1_ref[...],
                preferred_element_type=jnp.float32) + b1_ref[...]
    h = _prelu(h, alpha_ref[0])

    h = jnp.dot(h.astype(bf16), w2_ref[...],
                preferred_element_type=jnp.float32) + b2_ref[...]
    h = _prelu(h, alpha_ref[1])

    h = jnp.dot(h.astype(bf16), w3_ref[...],
                preferred_element_type=jnp.float32) + b3_ref[...]
    h = _prelu(h, alpha_ref[2])

    o_ref[...] = h.astype(o_ref.dtype)


@functools.partial(jax.jit, static_argnames=("tm",))
def preprocess_forward(x, params, *, tm=512):
    """x: (N, C_in) float32.  params: dict of weights/biases/PReLU alphas."""
    N, C_in = x.shape
    H = params["w1"].shape[1]
    C_out = params["w3"].shape[1]

    # ---- lane-dense feature padding (multiples of 128) ---------------------
    Cp = _round_up(max(C_in, _LANE), _LANE)
    Hp = _round_up(max(H, _LANE), _LANE)
    Op = _round_up(max(C_out, _LANE), _LANE)

    # ---- row tiling: no row padding; >=2 grid steps when N allows ----------
    tm_eff = max(_SUBLANE,
                 min(_round_up(tm, _SUBLANE),
                     _round_up(pl.cdiv(N, 2), _SUBLANE)))
    grid = (pl.cdiv(N, tm_eff),)

    f32, bf16 = jnp.float32, jnp.bfloat16

    x_in = x.astype(f32)
    if Cp != C_in:
        x_in = jnp.pad(x_in, ((0, 0), (0, Cp - C_in)))

    def pad_w(w, r, c):
        w = w.astype(f32)
        if w.shape != (r, c):
            w = jnp.pad(w, ((0, r - w.shape[0]), (0, c - w.shape[1])))
        return w.astype(bf16)                         # MXU-native storage

    def pad_b(b, c):
        b = b.astype(f32)
        if b.shape[0] != c:
            b = jnp.pad(b, (0, c - b.shape[0]))
        return b.reshape(1, c)                        # f32 bias (VPU path)

    w1 = pad_w(params["w1"], Cp, Hp); b1 = pad_b(params["b1"], Hp)
    w2 = pad_w(params["w2"], Hp, Hp); b2 = pad_b(params["b2"], Hp)
    w3 = pad_w(params["w3"], Hp, Op); b3 = pad_b(params["b3"], Op)
    alphas = jnp.stack(
        [params["a1"], params["a2"], params["a3"]]).astype(f32)

    # ---- cost estimate & VMEM budget ---------------------------------------
    flops = 2 * N * (Cp * Hp + Hp * Hp + Hp * Op)
    bytes_accessed = (4 * N * (Cp + Op)                       # activations
                      + 2 * (Cp * Hp + Hp * Hp + Hp * Op)     # bf16 weights
                      + 4 * (2 * Hp + Op))                    # f32 biases

    vmem_est = (2 * 4 * tm_eff * (Cp + Op)            # x/out tiles (double-buffered)
                + 2 * (Cp * Hp + Hp * Hp + Hp * Op)   # bf16 weights (single buffer)
                + 4 * (2 * Hp + Op)                   # biases
                + 3 * 4 * tm_eff * Hp)                # f32 intermediates headroom
    vmem_limit = None
    if vmem_est > 14 * 1024 * 1024:                   # above v5e's default scope
        vmem_limit = min(int(vmem_est * 3 // 2), 48 * 1024 * 1024)

    out = pl.pallas_call(
        preprocess_kernel,
        out_shape=jax.ShapeDtypeStruct((N, Op), x.dtype),
        grid_spec=pltpu.PrefetchScalarGridSpec(
            num_scalar_prefetch=0,
            grid=grid,
            in_specs=[
                # PReLU slopes live in SMEM (scalar reads)
                pl.BlockSpec(memory_space=pltpu.MemorySpace.SMEM),
                # activations: tile over batch rows only (lane axis = features)
                pl.BlockSpec((tm_eff, Cp), lambda i: (i, 0)),
                # resident, single-buffered weights / biases
                _resident_spec((Cp, Hp)), _resident_spec((1, Hp)),
                _resident_spec((Hp, Hp)), _resident_spec((1, Hp)),
                _resident_spec((Hp, Op)), _resident_spec((1, Op)),
            ],
            out_specs=pl.BlockSpec((tm_eff, Op), lambda i: (i, 0)),
        ),
        compiler_params=pltpu.CompilerParams(
            dimension_semantics=("parallel",),
            vmem_limit_bytes=vmem_limit),
        cost_estimate=pl.CostEstimate(
            flops=flops, transcendentals=0, bytes_accessed=bytes_accessed),
    )(alphas, x_in, w1, b1, w2, b2, w3, b3)

    # strip output-column padding only when it exists
    return out if Op == C_out else out[:, :C_out]


def init_params(key, in_channels, hidden_channels, out_channels):
    """Deterministic synthetic init (uniform fan-in style, like torch Linear)."""
    ks = jax.random.split(key, 6)

    def lin_init(kw, kb, fan_in, fan_out):
        bound = 1.0 / jnp.sqrt(fan_in)
        w = jax.random.uniform(kw, (fan_in, fan_out), jnp.float32, -bound, bound)
        b = jax.random.uniform(kb, (fan_out,), jnp.float32, -bound, bound)
        return w, b

    w1, b1 = lin_init(ks[0], ks[1], in_channels, hidden_channels)
    w2, b2 = lin_init(ks[2], ks[3], hidden_channels, hidden_channels)
    w3, b3 = lin_init(ks[4], ks[5], hidden_channels, out_channels)
    a = jnp.float32(0.25)  # torch.nn.PReLU default init
    return dict(w1=w1, b1=b1, w2=w2, b2=b2, w3=w3, b3=b3, a1=a, a2=a, a3=a)


def reference_forward_f32(x, p):
    """Pure-f32 reference (torch-module semantics)."""
    h = _prelu(x @ p["w1"] + p["b1"], p["a1"])
    h = _prelu(h @ p["w2"] + p["b2"], p["a2"])
    h = _prelu(h @ p["w3"] + p["b3"], p["a3"])
    return h


def reference_forward_bf16(x, p):
    """Reference that mirrors the kernel's bf16-MXU / f32-accumulate numerics."""
    bf = jnp.bfloat16
    h = x.astype(jnp.float32)
    for w, b, a in ((p["w1"], p["b1"], p["a1"]),
                    (p["w2"], p["b2"], p["a2"]),
                    (p["w3"], p["b3"], p["a3"])):
        h = jnp.dot(h.astype(bf), w.astype(bf),
                    preferred_element_type=jnp.float32) + b
        h = _prelu(h, a)
    return h


if __name__ == "__main__":
    key = jax.random.PRNGKey(0)
    kx, kp = jax.random.split(key)

    # Test 1: lane-aligned channels, N not a multiple of the row tile, and a
    # multi-step grid with a partial last block (tm=64 -> grid=(3,)).
    N, C_IN, HID, C_OUT = 192, 256, 256, 256
    x = jax.random.normal(kx, (N, C_IN), jnp.float32)
    params = init_params(kp, C_IN, HID, C_OUT)

    out = jax.block_until_ready(preprocess_forward(x, params, tm=64))
    assert out.shape == (N, C_OUT)
    ref_bf = reference_forward_bf16(x, params)
    ref_f32 = reference_forward_f32(x, params)
    assert jnp.allclose(out, ref_bf, atol=2e-3, rtol=2e-3), "mismatch vs bf16 ref"
    assert jnp.allclose(out, ref_f32, atol=6e-2, rtol=6e-2), "mismatch vs f32 ref"

    # Test 2: ragged batch + non-128-multiple features exercises the feature
    # zero-padding path, the output-column slice, and a partial row block.
    p2 = init_params(kp, 48, 96, 80)
    x2 = jax.random.normal(kx, (100, 48), jnp.float32)
    out2 = jax.block_until_ready(preprocess_forward(x2, p2, tm=64))
    assert out2.shape == (100, 80)
    ref2_bf = reference_forward_bf16(x2, p2)
    ref2_f32 = reference_forward_f32(x2, p2)
    assert jnp.allclose(out2, ref2_bf, atol=2e-3, rtol=2e-3), "mismatch (padded, bf16 ref)"
    assert jnp.allclose(out2, ref2_f32, atol=6e-2, rtol=6e-2), "mismatch (padded, f32 ref)"

    print("KERNEL_OK")
</pallas_src>

<mosaic_0001>
module attributes {stable_mosaic.version = 11 : i64} {
  func.func @preprocess_kernel(%arg0: i32, %arg1: memref<3xf32, #tpu.memory_space<smem>>, %arg2: memref<64x256xf32, #tpu.memory_space<vmem>>, %arg3: memref<256x256xbf16, #tpu.memory_space<vmem>>, %arg4: memref<1x256xf32, #tpu.memory_space<vmem>>, %arg5: memref<256x256xbf16, #tpu.memory_space<vmem>>, %arg6: memref<1x256xf32, #tpu.memory_space<vmem>>, %arg7: memref<256x256xbf16, #tpu.memory_space<vmem>>, %arg8: memref<1x256xf32, #tpu.memory_space<vmem>>, %arg9: memref<64x256xf32, #tpu.memory_space<vmem>>) attributes {dimension_semantics = [#tpu.dimension_semantics<parallel>], iteration_bounds = array<i64: 3>, scalar_prefetch = 0 : i64, scratch_operands = 0 : i64, tpu.core_type = #tpu.core_type<tc>, window_params = [{transform_indices = @transform_0, window_bounds = array<i64: 3>}, {transform_indices = @transform_1, window_bounds = array<i64: 64, 256>}, {pipeline_mode = #tpu.pipeline_mode<synchronous>, transform_indices = @transform_2, window_bounds = array<i64: 256, 256>}, {pipeline_mode = #tpu.pipeline_mode<synchronous>, transform_indices = @transform_3, window_bounds = array<i64: 1, 256>}, {pipeline_mode = #tpu.pipeline_mode<synchronous>, transform_indices = @transform_4, window_bounds = array<i64: 256, 256>}, {pipeline_mode = #tpu.pipeline_mode<synchronous>, transform_indices = @transform_5, window_bounds = array<i64: 1, 256>}, {pipeline_mode = #tpu.pipeline_mode<synchronous>, transform_indices = @transform_6, window_bounds = array<i64: 256, 256>}, {pipeline_mode = #tpu.pipeline_mode<synchronous>, transform_indices = @transform_7, window_bounds = array<i64: 1, 256>}, {transform_indices = @transform_8, window_bounds = array<i64: 64, 256>}]} {
    %c0 = arith.constant 0 : index
    %c0_0 = arith.constant 0 : index
    %0 = vector.load %arg2[%c0, %c0_0] : memref<64x256xf32, #tpu.memory_space<vmem>>, vector<64x256xf32>
    %1 = arith.truncf %0 : vector<64x256xf32> to vector<64x256xbf16>
    %c0_1 = arith.constant 0 : index
    %c0_2 = arith.constant 0 : index
    %2 = vector.load %arg3[%c0_1, %c0_2] : memref<256x256xbf16, #tpu.memory_space<vmem>>, vector<256x256xbf16>
    %cst = arith.constant dense<0.000000e+00> : vector<64x256xf32>
    %3 = tpu.matmul %1, %2, %cst {dimension_numbers = #tpu.dot_dimension_numbers<[1], [0], [0], [1], [0, 0, 1, 1], [], []>} : vector<64x256xbf16>, vector<256x256xbf16>, vector<64x256xf32> -> vector<64x256xf32>
    %c0_3 = arith.constant 0 : index
    %c0_4 = arith.constant 0 : index
    %4 = vector.load %arg4[%c0_3, %c0_4] : memref<1x256xf32, #tpu.memory_space<vmem>>, vector<1x256xf32>
    %5 = vector.broadcast %4 : vector<1x256xf32> to vector<64x256xf32>
    %6 = arith.addf %3, %5 : vector<64x256xf32>
    %c0_5 = arith.constant 0 : index
    %7 = memref.load %arg1[%c0_5] : memref<3xf32, #tpu.memory_space<smem>>
    %cst_6 = arith.constant 0.000000e+00 : f32
    %8 = vector.broadcast %cst_6 : f32 to vector<64x256xf32>
    %9 = arith.cmpf oge, %6, %8 : vector<64x256xf32>
    %10 = vector.broadcast %7 : f32 to vector<64x256xf32>
    %11 = arith.mulf %10, %6 : vector<64x256xf32>
    %12 = arith.select %9, %6, %11 : vector<64x256xi1>, vector<64x256xf32>
    %13 = arith.truncf %12 : vector<64x256xf32> to vector<64x256xbf16>
    %c0_7 = arith.constant 0 : index
    %c0_8 = arith.constant 0 : index
    %14 = vector.load %arg5[%c0_7, %c0_8] : memref<256x256xbf16, #tpu.memory_space<vmem>>, vector<256x256xbf16>
    %cst_9 = arith.constant dense<0.000000e+00> : vector<64x256xf32>
    %15 = tpu.matmul %13, %14, %cst_9 {dimension_numbers = #tpu.dot_dimension_numbers<[1], [0], [0], [1], [0, 0, 1, 1], [], []>} : vector<64x256xbf16>, vector<256x256xbf16>, vector<64x256xf32> -> vector<64x256xf32>
    %c0_10 = arith.constant 0 : index
    %c0_11 = arith.constant 0 : index
    %16 = vector.load %arg6[%c0_10, %c0_11] : memref<1x256xf32, #tpu.memory_space<vmem>>, vector<1x256xf32>
    %17 = vector.broadcast %16 : vector<1x256xf32> to vector<64x256xf32>
    %18 = arith.addf %15, %17 : vector<64x256xf32>
    %c1 = arith.constant 1 : index
    %19 = memref.load %arg1[%c1] : memref<3xf32, #tpu.memory_space<smem>>
    %cst_12 = arith.constant 0.000000e+00 : f32
    %20 = vector.broadcast %cst_12 : f32 to vector<64x256xf32>
    %21 = arith.cmpf oge, %18, %20 : vector<64x256xf32>
    %22 = vector.broadcast %19 : f32 to vector<64x256xf32>
    %23 = arith.mulf %22, %18 : vector<64x256xf32>
    %24 = arith.select %21, %18, %23 : vector<64x256xi1>, vector<64x256xf32>
    %25 = arith.truncf %24 : vector<64x256xf32> to vector<64x256xbf16>
    %c0_13 = arith.constant 0 : index
    %c0_14 = arith.constant 0 : index
    %26 = vector.load %arg7[%c0_13, %c0_14] : memref<256x256xbf16, #tpu.memory_space<vmem>>, vector<256x256xbf16>
    %cst_15 = arith.constant dense<0.000000e+00> : vector<64x256xf32>
    %27 = tpu.matmul %25, %26, %cst_15 {dimension_numbers = #tpu.dot_dimension_numbers<[1], [0], [0], [1], [0, 0, 1, 1], [], []>} : vector<64x256xbf16>, vector<256x256xbf16>, vector<64x256xf32> -> vector<64x256xf32>
    %c0_16 = arith.constant 0 : index
    %c0_17 = arith.constant 0 : index
    %28 = vector.load %arg8[%c0_16, %c0_17] : memref<1x256xf32, #tpu.memory_space<vmem>>, vector<1x256xf32>
    %29 = vector.broadcast %28 : vector<1x256xf32> to vector<64x256xf32>
    %30 = arith.addf %27, %29 : vector<64x256xf32>
    %c2 = arith.constant 2 : index
    %31 = memref.load %arg1[%c2] : memref<3xf32, #tpu.memory_space<smem>>
    %cst_18 = arith.constant 0.000000e+00 : f32
    %32 = vector.broadcast %cst_18 : f32 to vector<64x256xf32>
    %33 = arith.cmpf oge, %30, %32 : vector<64x256xf32>
    %34 = vector.broadcast %31 : f32 to vector<64x256xf32>
    %35 = arith.mulf %34, %30 : vector<64x256xf32>
    %36 = arith.select %33, %30, %35 : vector<64x256xi1>, vector<64x256xf32>
    %c0_19 = arith.constant 0 : index
    %c0_20 = arith.constant 0 : index
    %37 = vector.load %arg9[%c0_19, %c0_20] : memref<64x256xf32, #tpu.memory_space<vmem>>, vector<64x256xf32>
    tpu.vector_store %arg9[%c0_19, %c0_20], %36 {strides = array<i32>} : memref<64x256xf32, #tpu.memory_space<vmem>>, vector<64x256xf32>,
    return
  }
  func.func @transform_0(%arg0: i32) -> i32 {
    %c0_i32 = arith.constant 0 : i32
    %c0_i32_0 = arith.constant 0 : i32
    return %c0_i32 : i32
  }
  func.func @transform_1(%arg0: i32) -> (i32, i32) {
    %c0_i32 = arith.constant 0 : i32
    %c0_i32_0 = arith.constant 0 : i32
    return %arg0, %c0_i32 : i32, i32
  }
  func.func @transform_2(%arg0: i32) -> (i32, i32) {
    %c0_i32 = arith.constant 0 : i32
    %c0_i32_0 = arith.constant 0 : i32
    %c0_i32_1 = arith.constant 0 : i32
    return %c0_i32, %c0_i32_0 : i32, i32
  }
  func.func @transform_3(%arg0: i32) -> (i32, i32) {
    %c0_i32 = arith.constant 0 : i32
    %c0_i32_0 = arith.constant 0 : i32
    %c0_i32_1 = arith.constant 0 : i32
    return %c0_i32, %c0_i32_0 : i32, i32
  }
  func.func @transform_4(%arg0: i32) -> (i32, i32) {
    %c0_i32 = arith.constant 0 : i32
    %c0_i32_0 = arith.constant 0 : i32
    %c0_i32_1 = arith.constant 0 : i32
    return %c0_i32, %c0_i32_0 : i32, i32
  }
  func.func @transform_5(%arg0: i32) -> (i32, i32) {
    %c0_i32 = arith.constant 0 : i32
    %c0_i32_0 = arith.constant 0 : i32
    %c0_i32_1 = arith.constant 0 : i32
    return %c0_i32, %c0_i32_0 : i32, i32
  }
  func.func @transform_6(%arg0: i32) -> (i32, i32) {
    %c0_i32 = arith.constant 0 : i32
    %c0_i32_0 = arith.constant 0 : i32
    %c0_i32_1 = arith.constant 0 : i32
    return %c0_i32, %c0_i32_0 : i32, i32
  }
  func.func @transform_7(%arg0: i32) -> (i32, i32) {
    %c0_i32 = arith.constant 0 : i32
    %c0_i32_0 = arith.constant 0 : i32
    %c0_i32_1 = arith.constant 0 : i32
    return %c0_i32, %c0_i32_0 : i32, i32
  }
  func.func @transform_8(%arg0: i32) -> (i32, i32) {
    %c0_i32 = arith.constant 0 : i32
    %c0_i32_0 = arith.constant 0 : i32
    return %arg0, %c0_i32 : i32, i32
  }
}

</mosaic_0001>

<llo_original>
// kernel: preprocess_forward.1
$region0: #{preprocess_forward.1}
  #allocation0 [shape = 'u32[]', space=smem, size = 0x4, offset = 0x4, fixed_abs, tag = 'smem constant byte address 0x4 - core index']
  #allocation1 [shape = 'u32[72,128]{1,0:T(1,128)}', space=vmem, size = 0x9000, scoped, tag = 'internal scratch']
  %s0 = inlined_call_operand.vmem [shape: f32[3], index: 0, kind: input, shape index: {}]
  %s1 = inlined_call_operand.vmem [shape: f32[192,256], index: 1, kind: input, shape index: {}]
  %s2 = inlined_call_operand.vmem [shape: bf16[256,256], index: 2, kind: input, shape index: {}]
  %s3 = inlined_call_operand.vmem [shape: f32[1,256], index: 3, kind: input, shape index: {}]
  %s4 = inlined_call_operand.vmem [shape: bf16[256,256], index: 4, kind: input, shape index: {}]
  %s5 = inlined_call_operand.vmem [shape: f32[1,256], index: 5, kind: input, shape index: {}]
  %s6 = inlined_call_operand.vmem [shape: bf16[256,256], index: 6, kind: input, shape index: {}]
  %s7 = inlined_call_operand.vmem [shape: f32[1,256], index: 7, kind: input, shape index: {}]
  %s8 = inlined_call_operand.hbm [shape: f32[192,256], index: 8, kind: output, shape index: {}]
  %s9 = sld [smem:[#allocation0]]
  $region69: #{preprocess_forward.1} parent=0
    _
  %s11 = ssub.s32 1, %s9
  %s12 = scalar_select 0, %s11, %s9
  $region1: #{preprocess_forward.1} parent=0
    #allocation2 [shape = 'u8[512]{0}', space=smem, size = 0x200, scoped, tag = 'input window, operand 0, single buffered']
    #allocation3 [shape = 's32[2]{0}', space=sflag, size = 0x8, scoped, tag = 'scoped memory for preprocess_forward.1']
    #allocation4 [shape = 's32[2]{0}', space=sflag, size = 0x8, scoped, tag = 'scoped memory for preprocess_forward.1']
    #allocation5 [shape = 'u8[131072]{0}', space=vmem, size = 0x20000, scoped, tag = 'output window, operand 0']
    %13 = vsyncpa [#allocation4], 0
    %14 = vsyncpa [#allocation3], 0
    %s15 = scalar_lea.sflag [#allocation3], 1
    %16 = vsyncpa %s15, 0
    loop: start=0, step=1, limit=5
    $region2: #{preprocess_forward.1} parent=1 // loop_pre_header
      _
    $region3: #{preprocess_forward.1} parent=1 // loop_header
      %s18 = sphi 0, %s22
      %p19 = scmp.ge.s32.totalorder %s18, 5
      %s26 = sphi 0, %s26
      %s28 = sphi 0, %s26
      %s29 = sphi 0, %s28
      %s43 = sphi 0, %s29
      %s49 = sphi 0, %s51
      %s52 = sphi 0, %s49
      %s53 = sphi 0, %s52
      %s69 = sphi 0, %s53
      %s73 = sphi 0, %s73
      %s75 = sphi 0, %s73
      %s76 = sphi 0, %s75
      %s90 = sphi 0, %s76
      %s94 = sphi 0, %s94
      %s96 = sphi 0, %s94
      %s97 = sphi 0, %s96
      %s111 = sphi 0, %s97
      %s115 = sphi 0, %s115
      %s117 = sphi 0, %s115
      %s118 = sphi 0, %s117
      %s132 = sphi 0, %s118
      %s136 = sphi 0, %s136
      %s138 = sphi 0, %s136
      %s139 = sphi 0, %s138
      %s153 = sphi 0, %s139
      %s157 = sphi 0, %s157
      %s159 = sphi 0, %s157
      %s160 = sphi 0, %s159
      %s174 = sphi 0, %s160
      %s178 = sphi 0, %s178
      %s180 = sphi 0, %s178
      %s181 = sphi 0, %s180
      %s195 = sphi 0, %s181
      %s201 = sphi 0, %s203
      %s204 = sphi 0, %s201
      %s205 = sphi 0, %s204
      %s221 = sphi 0, %s205
    $region4: #{preprocess_forward.1} parent=1 // loop_header_branch
      %21 = sbr.rel (%p19) target = $region8
    $region5: #{preprocess_forward.1} parent=1 // loop_body
      %s23 = ssub.s32 %s18, 1
      %s24 = ssub.s32 %s18, 2
      %s25 = sadd.s32 %s18, 1
      %s27 = sadd.s32 %s26, 1
      %p30 = scmp.eq.s32.totalorder %s18, 2
      %p31 = scmp.ne.s32.totalorder %s26, %s28
      %p32 = scmp.eq.s32.totalorder %s18, 0
      %p33 = por %p31, %p32
      %p34 = scmp.ne.s32.totalorder %s26, %s28
      %p35 = scmp.eq.s32.totalorder %s23, 2
      %p36 = por %p34, %p35
      %p37 = scmp.ne.s32.totalorder %s28, %s29
      %p38 = scmp.eq.s32.totalorder %s23, 0
      %p39 = por %p37, %p38
      %p40 = scmp.ne.s32.totalorder %s28, %s29
      %p41 = scmp.eq.s32.totalorder %s24, 2
      %p42 = por %p40, %p41
      %p44 = scmp.ne.s32.totalorder %s29, %s43
      %p45 = scmp.eq.s32.totalorder %s24, 0
      %p46 = por %p44, %p45
      %s47 = ssub.s32 %s18, %s25
      %p48 = scmp.eq.s32.totalorder %s47, 0
      %s50 = sadd.s32 %s49, 1
      %s51 = scalar_select %p48, %s49, %s50
      %p54 = pneg %p48
      %p55 = scmp.eq.s32.totalorder %s18, 2
      %p56 = por %p54, %p55
      %p57 = scmp.ne.s32.totalorder %s49, %s52
      %p58 = scmp.eq.s32.totalorder %s18, 0
      %p59 = por %p57, %p58
      %p60 = scmp.ne.s32.totalorder %s49, %s52
      %p61 = scmp.eq.s32.totalorder %s23, 2
      %p62 = por %p60, %p61
      %p63 = scmp.ne.s32.totalorder %s52, %s53
      %p64 = scmp.eq.s32.totalorder %s23, 0
      %p65 = por %p63, %p64
      %p66 = scmp.ne.s32.totalorder %s52, %s53
      %p67 = scmp.eq.s32.totalorder %s24, 2
      %p68 = por %p66, %p67
      %p70 = scmp.ne.s32.totalorder %s53, %s69
      %p71 = scmp.eq.s32.totalorder %s24, 0
      %p72 = por %p70, %p71
      %s74 = sadd.s32 %s73, 1
      %p77 = scmp.eq.s32.totalorder %s18, 2
      %p78 = scmp.ne.s32.totalorder %s73, %s75
      %p79 = scmp.eq.s32.totalorder %s18, 0
      %p80 = por %p78, %p79
      %p81 = scmp.ne.s32.totalorder %s73, %s75
      %p82 = scmp.eq.s32.totalorder %s23, 2
      %p83 = por %p81, %p82
      %p84 = scmp.ne.s32.totalorder %s75, %s76
      %p85 = scmp.eq.s32.totalorder %s23, 0
      %p86 = por %p84, %p85
      %p87 = scmp.ne.s32.totalorder %s75, %s76
      %p88 = scmp.eq.s32.totalorder %s24, 2
      %p89 = por %p87, %p88
      %p91 = scmp.ne.s32.totalorder %s76, %s90
      %p92 = scmp.eq.s32.totalorder %s24, 0
      %p93 = por %p91, %p92
      %s95 = sadd.s32 %s94, 1
      %p98 = scmp.eq.s32.totalorder %s18, 2
      %p99 = scmp.ne.s32.totalorder %s94, %s96
      %p100 = scmp.eq.s32.totalorder %s18, 0
      %p101 = por %p99, %p100
      %p102 = scmp.ne.s32.totalorder %s94, %s96
      %p103 = scmp.eq.s32.totalorder %s23, 2
      %p104 = por %p102, %p103
      %p105 = scmp.ne.s32.totalorder %s96, %s97
      %p106 = scmp.eq.s32.totalorder %s23, 0
      %p107 = por %p105, %p106
      %p108 = scmp.ne.s32.totalorder %s96, %s97
      %p109 = scmp.eq.s32.totalorder %s24, 2
      %p110 = por %p108, %p109
      %p112 = scmp.ne.s32.totalorder %s97, %s111
      %p113 = scmp.eq.s32.totalorder %s24, 0
      %p114 = por %p112, %p113
      %s116 = sadd.s32 %s115, 1
      %p119 = scmp.eq.s32.totalorder %s18, 2
      %p120 = scmp.ne.s32.totalorder %s115, %s117
      %p121 = scmp.eq.s32.totalorder %s18, 0
      %p122 = por %p120, %p121
      %p123 = scmp.ne.s32.totalorder %s115, %s117
      %p124 = scmp.eq.s32.totalorder %s23, 2
      %p125 = por %p123, %p124
      %p126 = scmp.ne.s32.totalorder %s117, %s118
      %p127 = scmp.eq.s32.totalorder %s23, 0
      %p128 = por %p126, %p127
      %p129 = scmp.ne.s32.totalorder %s117, %s118
      %p130 = scmp.eq.s32.totalorder %s24, 2
      %p131 = por %p129, %p130
      %p133 = scmp.ne.s32.totalorder %s118, %s132
      %p134 = scmp.eq.s32.totalorder %s24, 0
      %p135 = por %p133, %p134
      %s137 = sadd.s32 %s136, 1
      %p140 = scmp.eq.s32.totalorder %s18, 2
      %p141 = scmp.ne.s32.totalorder %s136, %s138
      %p142 = scmp.eq.s32.totalorder %s18, 0
      %p143 = por %p141, %p142
      %p144 = scmp.ne.s32.totalorder %s136, %s138
      %p145 = scmp.eq.s32.totalorder %s23, 2
      %p146 = por %p144, %p145
      %p147 = scmp.ne.s32.totalorder %s138, %s139
      %p148 = scmp.eq.s32.totalorder %s23, 0
      %p149 = por %p147, %p148
      %p150 = scmp.ne.s32.totalorder %s138, %s139
      %p151 = scmp.eq.s32.totalorder %s24, 2
      %p152 = por %p150, %p151
      %p154 = scmp.ne.s32.totalorder %s139, %s153
      %p155 = scmp.eq.s32.totalorder %s24, 0
      %p156 = por %p154, %p155
      %s158 = sadd.s32 %s157, 1
      %p161 = scmp.eq.s32.totalorder %s18, 2
      %p162 = scmp.ne.s32.totalorder %s157, %s159
      %p163 = scmp.eq.s32.totalorder %s18, 0
      %p164 = por %p162, %p163
      %p165 = scmp.ne.s32.totalorder %s157, %s159
      %p166 = scmp.eq.s32.totalorder %s23, 2
      %p167 = por %p165, %p166
      %p168 = scmp.ne.s32.totalorder %s159, %s160
      %p169 = scmp.eq.s32.totalorder %s23, 0
      %p170 = por %p168, %p169
      %p171 = scmp.ne.s32.totalorder %s159, %s160
      %p172 = scmp.eq.s32.totalorder %s24, 2
      %p173 = por %p171, %p172
      %p175 = scmp.ne.s32.totalorder %s160, %s174
      %p176 = scmp.eq.s32.totalorder %s24, 0
      %p177 = por %p175, %p176
      %s179 = sadd.s32 %s178, 1
      %p182 = scmp.eq.s32.totalorder %s18, 2
      %p183 = scmp.ne.s32.totalorder %s178, %s180
      %p184 = scmp.eq.s32.totalorder %s18, 0
      %p185 = por %p183, %p184
      %p186 = scmp.ne.s32.totalorder %s178, %s180
      %p187 = scmp.eq.s32.totalorder %s23, 2
      %p188 = por %p186, %p187
      %p189 = scmp.ne.s32.totalorder %s180, %s181
      %p190 = scmp.eq.s32.totalorder %s23, 0
      %p191 = por %p189, %p190
      %p192 = scmp.ne.s32.totalorder %s180, %s181
      %p193 = scmp.eq.s32.totalorder %s24, 2
      %p194 = por %p192, %p193
      %p196 = scmp.ne.s32.totalorder %s181, %s195
      %p197 = scmp.eq.s32.totalorder %s24, 0
      %p198 = por %p196, %p197
      %s199 = ssub.s32 %s18, %s25
      %p200 = scmp.eq.s32.totalorder %s199, 0
      %s202 = sadd.s32 %s201, 1
      %s203 = scalar_select %p200, %s201, %s202
      %p206 = pneg %p200
      %p207 = scmp.eq.s32.totalorder %s18, 2
      %p208 = por %p206, %p207
      %p209 = scmp.ne.s32.totalorder %s201, %s204
      %p210 = scmp.eq.s32.totalorder %s18, 0
      %p211 = por %p209, %p210
      %p212 = scmp.ne.s32.totalorder %s201, %s204
      %p213 = scmp.eq.s32.totalorder %s23, 2
      %p214 = por %p212, %p213
      %p215 = scmp.ne.s32.totalorder %s204, %s205
      %p216 = scmp.eq.s32.totalorder %s23, 0
      %p217 = por %p215, %p216
      %p218 = scmp.ne.s32.totalorder %s204, %s205
      %p219 = scmp.eq.s32.totalorder %s24, 2
      %p220 = por %p218, %p219
      %p222 = scmp.ne.s32.totalorder %s205, %s221
      %p223 = scmp.eq.s32.totalorder %s24, 0
      %p224 = por %p222, %p223
      %p225 = scmp.le.s32.totalorder 1, %s18
      %p226 = scmp.lt.s32.totalorder %s18, 4
      %p227 = pnand %p225, %p226
      %p228 = pneg %p227
      // Predicated region
      $region9: #{preprocess_forward.1} parent=5 // pred_check
        _
      $region10: #{preprocess_forward.1} parent=5 // pred_check_branch
        %230 = sbr.rel (%p227) target = $region12
      $region11: #{preprocess_forward.1} parent=5 // pred_region
        %s231 = ssub.s32 %s18, 1
        // Predicated region
        $region13: #{preprocess_forward.1} parent=11 // pred_check
          %p232 = pneg %p39
        $region14: #{preprocess_forward.1} parent=11 // pred_check_branch
          %234 = sbr.rel (%p232) target = $region16
        $region15: #{preprocess_forward.1} parent=11 // pred_region
          %236 = vsyncadd [#allocation4], 0
          %s238 = sshll.u32 %s0, 4
          %s239 = int_to_ptr.vmem [resolvable:$true] %s238
          %241 = dma.vmem_to_smem %s239, 16, [#allocation2], [#allocation4]
        $region16: #{preprocess_forward.1} parent=11 // pred_fallthru
          _
        // Predicated region
        $region17: #{preprocess_forward.1} parent=11 // pred_check
          %p242 = pneg %p86
        $region18: #{preprocess_forward.1} parent=11 // pred_check_branch
          %244 = sbr.rel (%p242) target = $region20
        $region19: #{preprocess_forward.1} parent=11 // pred_region
          _
        $region20: #{preprocess_forward.1} parent=11 // pred_fallthru
          _
        // Predicated region
        $region21: #{preprocess_forward.1} parent=11 // pred_check
          %p245 = pneg %p107
        $region22: #{preprocess_forward.1} parent=11 // pred_check_branch
          %247 = sbr.rel (%p245) target = $region24
        $region23: #{preprocess_forward.1} parent=11 // pred_region
          _
        $region24: #{preprocess_forward.1} parent=11 // pred_fallthru
          _
        // Predicated region
        $region25: #{preprocess_forward.1} parent=11 // pred_check
          %p248 = pneg %p128
        $region26: #{preprocess_forward.1} parent=11 // pred_check_branch
          %250 = sbr.rel (%p248) target = $region28
        $region27: #{preprocess_forward.1} parent=11 // pred_region
          _
        $region28: #{preprocess_forward.1} parent=11 // pred_fallthru
          _
        // Predicated region
        $region29: #{preprocess_forward.1} parent=11 // pred_check
          %p251 = pneg %p149
        $region30: #{preprocess_forward.1} parent=11 // pred_check_branch
          %253 = sbr.rel (%p251) target = $region32
        $region31: #{preprocess_forward.1} parent=11 // pred_region
          _
        $region32: #{preprocess_forward.1} parent=11 // pred_fallthru
          _
        // Predicated region
        $region33: #{preprocess_forward.1} parent=11 // pred_check
          %p254 = pneg %p170
        $region34: #{preprocess_forward.1} parent=11 // pred_check_branch
          %256 = sbr.rel (%p254) target = $region36
        $region35: #{preprocess_forward.1} parent=11 // pred_region
          _
        $region36: #{preprocess_forward.1} parent=11 // pred_fallthru
          _
        // Predicated region
        $region37: #{preprocess_forward.1} parent=11 // pred_check
          %p257 = pneg %p191
        $region38: #{preprocess_forward.1} parent=11 // pred_check_branch
          %259 = sbr.rel (%p257) target = $region40
        $region39: #{preprocess_forward.1} parent=11 // pred_region
          _
        $region40: #{preprocess_forward.1} parent=11 // pred_fallthru
          _
      $region12: #{preprocess_forward.1} parent=5 // pred_fallthru
        _
      %p260 = scmp.lt.s32.totalorder %s18, 3
      // Predicated region
      $region41: #{preprocess_forward.1} parent=5 // pred_check
        %p261 = pneg %p260
      $region42: #{preprocess_forward.1} parent=5 // pred_check_branch
        %263 = sbr.rel (%p261) target = $region44
      $region43: #{preprocess_forward.1} parent=5 // pred_region
        // Predicated region
        $region45: #{preprocess_forward.1} parent=43 // pred_check
          %p264 = pneg %p59
        $region46: #{preprocess_forward.1} parent=43 // pred_check_branch
          %266 = sbr.rel (%p264) target = $region48
        $region47: #{preprocess_forward.1} parent=43 // pred_region
          %s267 = smul.u32 8, %s18
          %p268 = scmp.lt.s32.totalorder %s267, 23
          %s269 = scalar_select %p268, %s267, 23
          %s270 = smul.addr %s269, 2
          %s271 = smul.addr %s270, 8
          %s272 = scalar_lea.vmem %s1, %s271
          %s273 = smul.u32 8, %s18
        $region48: #{preprocess_forward.1} parent=43 // pred_fallthru
          _
      $region44: #{preprocess_forward.1} parent=5 // pred_fallthru
        _
      %p274 = scmp.le.s32.totalorder 1, %s18
      %p275 = scmp.lt.s32.totalorder %s18, 4
      %p276 = pnand %p274, %p275
      %p277 = pneg %p276
      // Predicated region
      $region49: #{preprocess_forward.1} parent=5 // pred_check
        _
      $region50: #{preprocess_forward.1} parent=5 // pred_check_branch
        %279 = sbr.rel (%p276) target = $region52
      $region51: #{preprocess_forward.1} parent=5 // pred_region
        %s280 = ssub.s32 %s18, 1
        // Predicated region
        $region53: #{preprocess_forward.1} parent=51 // pred_check
          %p281 = pneg %p39
        $region54: #{preprocess_forward.1} parent=51 // pred_check_branch
          %283 = sbr.rel (%p281) target = $region56
        $region55: #{preprocess_forward.1} parent=51 // pred_region
          %285 = dma.done [#allocation4], 16
        $region56: #{preprocess_forward.1} parent=51 // pred_fallthru
          _
        %286 = sfence
        %p287 = pneg %p39
        %p288 = pneg %p36
        %s289 = smul.u32 8, %s23
        %p290 = scmp.lt.s32.totalorder %s289, 23
        %s291 = scalar_select %p290, %s289, 23
        %s292 = smul.addr %s291, 2
        %s293 = smul.addr %s292, 8
        %s294 = scalar_lea.vmem %s1, %s293
        %p295 = pneg %p65
        %p296 = pneg %p62
        %p297 = pneg %p86
        %p298 = pneg %p83
        %p299 = pneg %p107
        %p300 = pneg %p104
        %p301 = pneg %p128
        %p302 = pneg %p125
        %p303 = pneg %p149
        %p304 = pneg %p146
        %p305 = pneg %p170
        %p306 = pneg %p167
        %p307 = pneg %p191
        %p308 = pneg %p188
        %p309 = pneg %p217
        %p310 = pneg %p214
        %s311 = sand.u32 %s204, 1
        %s312 = scalar_lea.sflag [#allocation3], %s311
        %s313 = sand.u32 %s204, 1
        %s314 = smul.addr %s313, 128
        %s315 = scalar_lea.vmem [#allocation5], %s314
        %s316 = smul.u32 8, %s23
        %p317 = scmp.lt.s32.totalorder %s316, 23
        %s318 = scalar_select %p317, %s316, 23
        %s319 = smul.addr %s318, 2
        %s320 = smul.addr %s319, 8
        %s321 = scalar_lea.vmem %s1, %s320
        %s322 = smul.u32 8, %s23
        %s323 = smul.u32 8, %s23
        %v324 = vld [vmem:[%s321] sm:$0xff]
        %v325 = vld [vmem:[%s321 + $0x8] sm:$0xff]
        %v326 = vld [vmem:[%s321 + $0x10] sm:$0xff]
        %v327 = vld [vmem:[%s321 + $0x18] sm:$0xff]
        %v328 = vld [vmem:[%s321 + $0x20] sm:$0xff]
        %v329 = vld [vmem:[%s321 + $0x28] sm:$0xff]
        %v330 = vld [vmem:[%s321 + $0x30] sm:$0xff]
        %v331 = vld [vmem:[%s321 + $0x38] sm:$0xff]
        %v332 = vld [vmem:[%s321 + $0x40] sm:$0xff]
        %v333 = vld [vmem:[%s321 + $0x48] sm:$0xff]
        %v334 = vld [vmem:[%s321 + $0x50] sm:$0xff]
        %v335 = vld [vmem:[%s321 + $0x58] sm:$0xff]
        %v336 = vld [vmem:[%s321 + $0x60] sm:$0xff]
        %v337 = vld [vmem:[%s321 + $0x68] sm:$0xff]
        %v338 = vld [vmem:[%s321 + $0x70] sm:$0xff]
        %v339 = vld [vmem:[%s321 + $0x78] sm:$0xff]
        %v340 = vpack.c.bf16 %v326, %v324
        %v341 = vpack.c.bf16 %v327, %v325
        %v342 = vpack.c.bf16 %v330, %v328
        %v343 = vpack.c.bf16 %v331, %v329
        %v344 = vpack.c.bf16 %v334, %v332
        %v345 = vpack.c.bf16 %v335, %v333
        %v346 = vpack.c.bf16 %v338, %v336
        %v347 = vpack.c.bf16 %v339, %v337
        %v348 = vld [vmem:[%s2] sm:$0xff]
        %v349 = vld [vmem:[%s2 + $0x8] sm:$0xff]
        %v350 = vld [vmem:[%s2 + $0x10] sm:$0xff]
        %v351 = vld [vmem:[%s2 + $0x18] sm:$0xff]
        %v352 = vld [vmem:[%s2 + $0x20] sm:$0xff]
        %v353 = vld [vmem:[%s2 + $0x28] sm:$0xff]
        %v354 = vld [vmem:[%s2 + $0x30] sm:$0xff]
        %v355 = vld [vmem:[%s2 + $0x38] sm:$0xff]
        %v356 = vld [vmem:[%s2 + $0x40] sm:$0xff]
        %v357 = vld [vmem:[%s2 + $0x48] sm:$0xff]
        %v358 = vld [vmem:[%s2 + $0x50] sm:$0xff]
        %v359 = vld [vmem:[%s2 + $0x58] sm:$0xff]
        %v360 = vld [vmem:[%s2 + $0x60] sm:$0xff]
        %v361 = vld [vmem:[%s2 + $0x68] sm:$0xff]
        %v362 = vld [vmem:[%s2 + $0x70] sm:$0xff]
        %v363 = vld [vmem:[%s2 + $0x78] sm:$0xff]
        %v364 = vld [vmem:[%s2 + $0x80] sm:$0xff]
        %v365 = vld [vmem:[%s2 + $0x88] sm:$0xff]
        %v366 = vld [vmem:[%s2 + $0x90] sm:$0xff]
        %v367 = vld [vmem:[%s2 + $0x98] sm:$0xff]
        %v368 = vld [vmem:[%s2 + $0xa0] sm:$0xff]
        %v369 = vld [vmem:[%s2 + $0xa8] sm:$0xff]
        %v370 = vld [vmem:[%s2 + $0xb0] sm:$0xff]
        %v371 = vld [vmem:[%s2 + $0xb8] sm:$0xff]
        %v372 = vld [vmem:[%s2 + $0xc0] sm:$0xff]
        %v373 = vld [vmem:[%s2 + $0xc8] sm:$0xff]
        %v374 = vld [vmem:[%s2 + $0xd0] sm:$0xff]
        %v375 = vld [vmem:[%s2 + $0xd8] sm:$0xff]
        %v376 = vld [vmem:[%s2 + $0xe0] sm:$0xff]
        %v377 = vld [vmem:[%s2 + $0xe8] sm:$0xff]
        %v378 = vld [vmem:[%s2 + $0xf0] sm:$0xff]
        %v379 = vld [vmem:[%s2 + $0xf8] sm:$0xff]
        %v380 = vld [vmem:[%s3] sm:$0x3]
        %v382 = vperm.slane %v380, 0
        %v383 = vperm.slane %v380, 1
        %v418 = vunpack.c.l.b16 %v348
        %v419 = vunpack.c.h.b16 %v348
        %v420 = vunpack.c.l.b16 %v349
        %v421 = vunpack.c.h.b16 %v349
        %v422 = vunpack.c.l.b16 %v350
        %v423 = vunpack.c.h.b16 %v350
        %v424 = vunpack.c.l.b16 %v351
        %v425 = vunpack.c.h.b16 %v351
        %v426 = vunpack.c.l.b16 %v352
        %v427 = vunpack.c.h.b16 %v352
        %v428 = vunpack.c.l.b16 %v353
        %v429 = vunpack.c.h.b16 %v353
        %v430 = vunpack.c.l.b16 %v354
        %v431 = vunpack.c.h.b16 %v354
        %v432 = vunpack.c.l.b16 %v355
        %v433 = vunpack.c.h.b16 %v355
        %v434 = vunpack.c.l.b16 %v356
        %v435 = vunpack.c.h.b16 %v356
        %v436 = vunpack.c.l.b16 %v357
        %v437 = vunpack.c.h.b16 %v357
        %v438 = vunpack.c.l.b16 %v358
        %v439 = vunpack.c.h.b16 %v358
        %v440 = vunpack.c.l.b16 %v359
        %v441 = vunpack.c.h.b16 %v359
        %v442 = vunpack.c.l.b16 %v360
        %v443 = vunpack.c.h.b16 %v360
        %v444 = vunpack.c.l.b16 %v361
        %v445 = vunpack.c.h.b16 %v361
        %v446 = vunpack.c.l.b16 %v362
        %v447 = vunpack.c.h.b16 %v362
        %v448 = vunpack.c.l.b16 %v363
        %v449 = vunpack.c.h.b16 %v363
        %v450 = vunpack.c.l.b16 %v364
        %v451 = vunpack.c.h.b16 %v364
        %v452 = vunpack.c.l.b16 %v365
        %v453 = vunpack.c.h.b16 %v365
        %v454 = vunpack.c.l.b16 %v366
        %v455 = vunpack.c.h.b16 %v366
        %v456 = vunpack.c.l.b16 %v367
        %v457 = vunpack.c.h.b16 %v367
        %v458 = vunpack.c.l.b16 %v368
        %v459 = vunpack.c.h.b16 %v368
        %v460 = vunpack.c.l.b16 %v369
        %v461 = vunpack.c.h.b16 %v369
        %v462 = vunpack.c.l.b16 %v370
        %v463 = vunpack.c.h.b16 %v370
        %v464 = vunpack.c.l.b16 %v371
        %v465 = vunpack.c.h.b16 %v371
        %v466 = vunpack.c.l.b16 %v372
        %v467 = vunpack.c.h.b16 %v372
        %v468 = vunpack.c.l.b16 %v373
        %v469 = vunpack.c.h.b16 %v373
        %v470 = vunpack.c.l.b16 %v374
        %v471 = vunpack.c.h.b16 %v374
        %v472 = vunpack.c.l.b16 %v375
        %v473 = vunpack.c.h.b16 %v375
        %v474 = vunpack.c.l.b16 %v376
        %v475 = vunpack.c.h.b16 %v376
        %v476 = vunpack.c.l.b16 %v377
        %v477 = vunpack.c.h.b16 %v377
        %v478 = vunpack.c.l.b16 %v378
        %v479 = vunpack.c.h.b16 %v378
        %v480 = vunpack.c.l.b16 %v379
        %v481 = vunpack.c.h.b16 %v379
        %v482 = vpack.c.b16 %v420, %v418
        %v483 = vpack.c.b16 %v421, %v419
        %v484 = vpack.c.b16 %v424, %v422
        %v485 = vpack.c.b16 %v425, %v423
        %v486 = vpack.c.b16 %v428, %v426
        %v487 = vpack.c.b16 %v429, %v427
        %v488 = vpack.c.b16 %v432, %v430
        %v489 = vpack.c.b16 %v433, %v431
        %v490 = vpack.c.b16 %v436, %v434
        %v491 = vpack.c.b16 %v437, %v435
        %v492 = vpack.c.b16 %v440, %v438
        %v493 = vpack.c.b16 %v441, %v439
        %v494 = vpack.c.b16 %v444, %v442
        %v495 = vpack.c.b16 %v445, %v443
        %v496 = vpack.c.b16 %v448, %v446
        %v497 = vpack.c.b16 %v449, %v447
        %v498 = vpack.c.b16 %v452, %v450
        %v499 = vpack.c.b16 %v453, %v451
        %v500 = vpack.c.b16 %v456, %v454
        %v501 = vpack.c.b16 %v457, %v455
        %v502 = vpack.c.b16 %v460, %v458
        %v503 = vpack.c.b16 %v461, %v459
        %v504 = vpack.c.b16 %v464, %v462
        %v505 = vpack.c.b16 %v465, %v463
        %v506 = vpack.c.b16 %v468, %v466
        %v507 = vpack.c.b16 %v469, %v467
        %v508 = vpack.c.b16 %v472, %v470
        %v509 = vpack.c.b16 %v473, %v471
        %v510 = vpack.c.b16 %v476, %v474
        %v511 = vpack.c.b16 %v477, %v475
        %v512 = vpack.c.b16 %v480, %v478
        %v513 = vpack.c.b16 %v481, %v479
        %546 = vmatpush.bf16.msra.mxu0 %v496
        %547 = vmatpush.bf16.msra.mxu0 %v494
        %548 = vmatpush.bf16.msra.mxu0 %v492
        %549 = vmatpush.bf16.msra.mxu0 %v490
        %550 = vmatpush.bf16.msra.mxu0 %v488
        %551 = vmatpush.bf16.msra.mxu0 %v486
        %552 = vmatpush.bf16.msra.mxu0 %v484
        %553 = vmatpush.bf16.msra.mxu0 %v482
        %554 = vmatmul.bf16.gmra.mxu0 %v340
        %v555 = vpop.f32.mrf.mxu0
        %v556 = vadd.f32 %v382, %v555
        %v557 = vpop.f32.mrf.mxu0
        %v558 = vadd.f32 %v382, %v557
        %559 = vmatmul.bf16.gmra.mxu0 %v342
        %v560 = vpop.f32.mrf.mxu0
        %v561 = vadd.f32 %v382, %v560
        %v562 = vpop.f32.mrf.mxu0
        %v563 = vadd.f32 %v382, %v562
        %564 = vmatmul.bf16.gmra.mxu0 %v344
        %v565 = vpop.f32.mrf.mxu0
        %v566 = vadd.f32 %v382, %v565
        %v567 = vpop.f32.mrf.mxu0
        %v568 = vadd.f32 %v382, %v567
        %569 = vmatmul.bf16.gmra.mxu0 %v346
        %v570 = vpop.f32.mrf.mxu0
        %v571 = vadd.f32 %v382, %v570
        %v572 = vpop.f32.mrf.mxu0
        %v573 = vadd.f32 %v382, %v572
        %574 = vdwg.mxu0
        %575 = vmatpush.bf16.msra.mxu0 %v512
        %576 = vmatpush.bf16.msra.mxu0 %v510
        %577 = vmatpush.bf16.msra.mxu0 %v508
        %578 = vmatpush.bf16.msra.mxu0 %v506
        %579 = vmatpush.bf16.msra.mxu0 %v504
        %580 = vmatpush.bf16.msra.mxu0 %v502
        %581 = vmatpush.bf16.msra.mxu0 %v500
        %582 = vmatpush.bf16.msra.mxu0 %v498
        %583 = vmatmul.bf16.gmra.mxu0 %v341
        %v584 = vpop.f32.mrf.mxu0
        %v585 = vadd.f32 %v556, %v584
        %v586 = vpop.f32.mrf.mxu0
        %v587 = vadd.f32 %v558, %v586
        %588 = vmatmul.bf16.gmra.mxu0 %v343
        %v589 = vpop.f32.mrf.mxu0
        %v590 = vadd.f32 %v561, %v589
        %v591 = vpop.f32.mrf.mxu0
        %v592 = vadd.f32 %v563, %v591
        %593 = vmatmul.bf16.gmra.mxu0 %v345
        %v594 = vpop.f32.mrf.mxu0
        %v595 = vadd.f32 %v566, %v594
        %v596 = vpop.f32.mrf.mxu0
        %v597 = vadd.f32 %v568, %v596
        %598 = vmatmul.bf16.gmra.mxu0 %v347
        %v599 = vpop.f32.mrf.mxu0
        %v600 = vadd.f32 %v571, %v599
        %v601 = vpop.f32.mrf.mxu0
        %v602 = vadd.f32 %v573, %v601
        %603 = vdwg.mxu0
        %604 = vmatpush.bf16.msra.mxu0 %v497
        %605 = vmatpush.bf16.msra.mxu0 %v495
        %606 = vmatpush.bf16.msra.mxu0 %v493
        %607 = vmatpush.bf16.msra.mxu0 %v491
        %608 = vmatpush.bf16.msra.mxu0 %v489
        %609 = vmatpush.bf16.msra.mxu0 %v487
        %610 = vmatpush.bf16.msra.mxu0 %v485
        %611 = vmatpush.bf16.msra.mxu0 %v483
        %612 = vmatmul.bf16.gmra.mxu0 %v340
        %v613 = vpop.f32.mrf.mxu0
        %v614 = vadd.f32 %v383, %v613
        %v615 = vpop.f32.mrf.mxu0
        %v616 = vadd.f32 %v383, %v615
        %617 = vmatmul.bf16.gmra.mxu0 %v342
        %v618 = vpop.f32.mrf.mxu0
        %v619 = vadd.f32 %v383, %v618
        %v620 = vpop.f32.mrf.mxu0
        %v621 = vadd.f32 %v383, %v620
        %622 = vmatmul.bf16.gmra.mxu0 %v344
        %v623 = vpop.f32.mrf.mxu0
        %v624 = vadd.f32 %v383, %v623
        %v625 = vpop.f32.mrf.mxu0
        %v626 = vadd.f32 %v383, %v625
        %627 = vmatmul.bf16.gmra.mxu0 %v346
        %v628 = vpop.f32.mrf.mxu0
        %v629 = vadd.f32 %v383, %v628
        %v630 = vpop.f32.mrf.mxu0
        %v631 = vadd.f32 %v383, %v630
        %632 = vdwg.mxu0
        %633 = vmatpush.bf16.msra.mxu0 %v513
        %634 = vmatpush.bf16.msra.mxu0 %v511
        %635 = vmatpush.bf16.msra.mxu0 %v509
        %636 = vmatpush.bf16.msra.mxu0 %v507
        %637 = vmatpush.bf16.msra.mxu0 %v505
        %638 = vmatpush.bf16.msra.mxu0 %v503
        %639 = vmatpush.bf16.msra.mxu0 %v501
        %640 = vmatpush.bf16.msra.mxu0 %v499
        %641 = vmatmul.bf16.gmra.mxu0 %v341
        %v642 = vpop.f32.mrf.mxu0
        %v643 = vadd.f32 %v614, %v642
        %v644 = vpop.f32.mrf.mxu0
        %v645 = vadd.f32 %v616, %v644
        %646 = vmatmul.bf16.gmra.mxu0 %v343
        %v647 = vpop.f32.mrf.mxu0
        %v648 = vadd.f32 %v619, %v647
        %v649 = vpop.f32.mrf.mxu0
        %v650 = vadd.f32 %v621, %v649
        %651 = vmatmul.bf16.gmra.mxu0 %v345
        %v652 = vpop.f32.mrf.mxu0
        %v653 = vadd.f32 %v624, %v652
        %v654 = vpop.f32.mrf.mxu0
        %v655 = vadd.f32 %v626, %v654
        %656 = vmatmul.bf16.gmra.mxu0 %v347
        %v657 = vpop.f32.mrf.mxu0
        %v658 = vadd.f32 %v629, %v657
        %v659 = vpop.f32.mrf.mxu0
        %v660 = vadd.f32 %v631, %v659
        %661 = vdwg.mxu0
        %s662 = sld [smem:[#allocation2]]
        %vm663 = vcmp.ge.f32.partialorder %v585, 0.0
        %vm664 = vcmp.ge.f32.partialorder %v643, 0.0
        %vm665 = vcmp.ge.f32.partialorder %v587, 0.0
        %vm666 = vcmp.ge.f32.partialorder %v645, 0.0
        %vm667 = vcmp.ge.f32.partialorder %v590, 0.0
        %vm668 = vcmp.ge.f32.partialorder %v648, 0.0
        %vm669 = vcmp.ge.f32.partialorder %v592, 0.0
        %vm670 = vcmp.ge.f32.partialorder %v650, 0.0
        %vm671 = vcmp.ge.f32.partialorder %v595, 0.0
        %vm672 = vcmp.ge.f32.partialorder %v653, 0.0
        %vm673 = vcmp.ge.f32.partialorder %v597, 0.0
        %vm674 = vcmp.ge.f32.partialorder %v655, 0.0
        %vm675 = vcmp.ge.f32.partialorder %v600, 0.0
        %vm676 = vcmp.ge.f32.partialorder %v658, 0.0
        %vm677 = vcmp.ge.f32.partialorder %v602, 0.0
        %vm678 = vcmp.ge.f32.partialorder %v660, 0.0
        %v679 = vstv %s662
        %v680 = vmul.f32 %v679, %v585
        %v681 = vmul.f32 %v679, %v643
        %v682 = vmul.f32 %v679, %v587
        %v683 = vmul.f32 %v679, %v645
        %v684 = vmul.f32 %v679, %v590
        %v685 = vmul.f32 %v679, %v648
        %v686 = vmul.f32 %v679, %v592
        %v687 = vmul.f32 %v679, %v650
        %v688 = vmul.f32 %v679, %v595
        %v689 = vmul.f32 %v679, %v653
        %v690 = vmul.f32 %v679, %v597
        %v691 = vmul.f32 %v679, %v655
        %v692 = vmul.f32 %v679, %v600
        %v693 = vmul.f32 %v679, %v658
        %v694 = vmul.f32 %v679, %v602
        %v695 = vmul.f32 %v679, %v660
        %v696 = vsel %vm663, %v585, %v680
        %v697 = vsel %vm664, %v643, %v681
        %v698 = vsel %vm665, %v587, %v682
        %v699 = vsel %vm666, %v645, %v683
        %v700 = vsel %vm667, %v590, %v684
        %v701 = vsel %vm668, %v648, %v685
        %v702 = vsel %vm669, %v592, %v686
        %v703 = vsel %vm670, %v650, %v687
        %v704 = vsel %vm671, %v595, %v688
        %v705 = vsel %vm672, %v653, %v689
        %v706 = vsel %vm673, %v597, %v690
        %v707 = vsel %vm674, %v655, %v691
        %v708 = vsel %vm675, %v600, %v692
        %v709 = vsel %vm676, %v658, %v693
        %v710 = vsel %vm677, %v602, %v694
        %v711 = vsel %vm678, %v660, %v695
        %v712 = vpack.c.bf16 %v698, %v696
        %v713 = vpack.c.bf16 %v699, %v697
        %v714 = vpack.c.bf16 %v702, %v700
        %v715 = vpack.c.bf16 %v703, %v701
        %v716 = vpack.c.bf16 %v706, %v704
        %v717 = vpack.c.bf16 %v707, %v705
        %v718 = vpack.c.bf16 %v710, %v708
        %v719 = vpack.c.bf16 %v711, %v709
        %v720 = vld [vmem:[%s4] sm:$0xff]
        %v721 = vld [vmem:[%s4 + $0x8] sm:$0xff]
        %v722 = vld [vmem:[%s4 + $0x10] sm:$0xff]
        %v723 = vld [vmem:[%s4 + $0x18] sm:$0xff]
        %v724 = vld [vmem:[%s4 + $0x20] sm:$0xff]
        %v725 = vld [vmem:[%s4 + $0x28] sm:$0xff]
        %v726 = vld [vmem:[%s4 + $0x30] sm:$0xff]
        %v727 = vld [vmem:[%s4 + $0x38] sm:$0xff]
        %v728 = vld [vmem:[%s4 + $0x40] sm:$0xff]
        %v729 = vld [vmem:[%s4 + $0x48] sm:$0xff]
        %v730 = vld [vmem:[%s4 + $0x50] sm:$0xff]
        %v731 = vld [vmem:[%s4 + $0x58] sm:$0xff]
        %v732 = vld [vmem:[%s4 + $0x60] sm:$0xff]
        %v733 = vld [vmem:[%s4 + $0x68] sm:$0xff]
        %v734 = vld [vmem:[%s4 + $0x70] sm:$0xff]
        %v735 = vld [vmem:[%s4 + $0x78] sm:$0xff]
        %v736 = vld [vmem:[%s4 + $0x80] sm:$0xff]
        %v737 = vld [vmem:[%s4 + $0x88] sm:$0xff]
        %v738 = vld [vmem:[%s4 + $0x90] sm:$0xff]
        %v739 = vld [vmem:[%s4 + $0x98] sm:$0xff]
        %v740 = vld [vmem:[%s4 + $0xa0] sm:$0xff]
        %v741 = vld [vmem:[%s4 + $0xa8] sm:$0xff]
        %v742 = vld [vmem:[%s4 + $0xb0] sm:$0xff]
        %v743 = vld [vmem:[%s4 + $0xb8] sm:$0xff]
        %v744 = vld [vmem:[%s4 + $0xc0] sm:$0xff]
        %v745 = vld [vmem:[%s4 + $0xc8] sm:$0xff]
        %v746 = vld [vmem:[%s4 + $0xd0] sm:$0xff]
        %v747 = vld [vmem:[%s4 + $0xd8] sm:$0xff]
        %v748 = vld [vmem:[%s4 + $0xe0] sm:$0xff]
        %v749 = vld [vmem:[%s4 + $0xe8] sm:$0xff]
        %v750 = vld [vmem:[%s4 + $0xf0] sm:$0xff]
        %v751 = vld [vmem:[%s4 + $0xf8] sm:$0xff]
        %v752 = vld [vmem:[%s5] sm:$0x3]
        %v754 = vperm.slane %v752, 0
        %v755 = vperm.slane %v752, 1
        %v790 = vunpack.c.l.b16 %v720
        %v791 = vunpack.c.h.b16 %v720
        %v792 = vunpack.c.l.b16 %v721
        %v793 = vunpack.c.h.b16 %v721
        %v794 = vunpack.c.l.b16 %v722
        %v795 = vunpack.c.h.b16 %v722
        %v796 = vunpack.c.l.b16 %v723
        %v797 = vunpack.c.h.b16 %v723
        %v798 = vunpack.c.l.b16 %v724
        %v799 = vunpack.c.h.b16 %v724
        %v800 = vunpack.c.l.b16 %v725
        %v801 = vunpack.c.h.b16 %v725
        %v802 = vunpack.c.l.b16 %v726
        %v803 = vunpack.c.h.b16 %v726
        %v804 = vunpack.c.l.b16 %v727
        %v805 = vunpack.c.h.b16 %v727
        %v806 = vunpack.c.l.b16 %v728
        %v807 = vunpack.c.h.b16 %v728
        %v808 = vunpack.c.l.b16 %v729
        %v809 = vunpack.c.h.b16 %v729
        %v810 = vunpack.c.l.b16 %v730
        %v811 = vunpack.c.h.b16 %v730
        %v812 = vunpack.c.l.b16 %v731
        %v813 = vunpack.c.h.b16 %v731
        %v814 = vunpack.c.l.b16 %v732
        %v815 = vunpack.c.h.b16 %v732
        %v816 = vunpack.c.l.b16 %v733
        %v817 = vunpack.c.h.b16 %v733
        %v818 = vunpack.c.l.b16 %v734
        %v819 = vunpack.c.h.b16 %v734
        %v820 = vunpack.c.l.b16 %v735
        %v821 = vunpack.c.h.b16 %v735
        %v822 = vunpack.c.l.b16 %v736
        %v823 = vunpack.c.h.b16 %v736
        %v824 = vunpack.c.l.b16 %v737
        %v825 = vunpack.c.h.b16 %v737
        %v826 = vunpack.c.l.b16 %v738
        %v827 = vunpack.c.h.b16 %v738
        %v828 = vunpack.c.l.b16 %v739
        %v829 = vunpack.c.h.b16 %v739
        %v830 = vunpack.c.l.b16 %v740
        %v831 = vunpack.c.h.b16 %v740
        %v832 = vunpack.c.l.b16 %v741
        %v833 = vunpack.c.h.b16 %v741
        %v834 = vunpack.c.l.b16 %v742
        %v835 = vunpack.c.h.b16 %v742
        %v836 = vunpack.c.l.b16 %v743
        %v837 = vunpack.c.h.b16 %v743
        %v838 = vunpack.c.l.b16 %v744
        %v839 = vunpack.c.h.b16 %v744
        %v840 = vunpack.c.l.b16 %v745
        %v841 = vunpack.c.h.b16 %v745
        %v842 = vunpack.c.l.b16 %v746
        %v843 = vunpack.c.h.b16 %v746
        %v844 = vunpack.c.l.b16 %v747
        %v845 = vunpack.c.h.b16 %v747
        %v846 = vunpack.c.l.b16 %v748
        %v847 = vunpack.c.h.b16 %v748
        %v848 = vunpack.c.l.b16 %v749
        %v849 = vunpack.c.h.b16 %v749
        %v850 = vunpack.c.l.b16 %v750
        %v851 = vunpack.c.h.b16 %v750
        %v852 = vunpack.c.l.b16 %v751
        %v853 = vunpack.c.h.b16 %v751
        %v854 = vpack.c.b16 %v792, %v790
        %v855 = vpack.c.b16 %v793, %v791
        %v856 = vpack.c.b16 %v796, %v794
        %v857 = vpack.c.b16 %v797, %v795
        %v858 = vpack.c.b16 %v800, %v798
        %v859 = vpack.c.b16 %v801, %v799
        %v860 = vpack.c.b16 %v804, %v802
        %v861 = vpack.c.b16 %v805, %v803
        %v862 = vpack.c.b16 %v808, %v806
        %v863 = vpack.c.b16 %v809, %v807
        %v864 = vpack.c.b16 %v812, %v810
        %v865 = vpack.c.b16 %v813, %v811
        %v866 = vpack.c.b16 %v816, %v814
        %v867 = vpack.c.b16 %v817, %v815
        %v868 = vpack.c.b16 %v820, %v818
        %v869 = vpack.c.b16 %v821, %v819
        %v870 = vpack.c.b16 %v824, %v822
        %v871 = vpack.c.b16 %v825, %v823
        %v872 = vpack.c.b16 %v828, %v826
        %v873 = vpack.c.b16 %v829, %v827
        %v874 = vpack.c.b16 %v832, %v830
        %v875 = vpack.c.b16 %v833, %v831
        %v876 = vpack.c.b16 %v836, %v834
        %v877 = vpack.c.b16 %v837, %v835
        %v878 = vpack.c.b16 %v840, %v838
        %v879 = vpack.c.b16 %v841, %v839
        %v880 = vpack.c.b16 %v844, %v842
        %v881 = vpack.c.b16 %v845, %v843
        %v882 = vpack.c.b16 %v848, %v846
        %v883 = vpack.c.b16 %v849, %v847
        %v884 = vpack.c.b16 %v852, %v850
        %v885 = vpack.c.b16 %v853, %v851
        %918 = vmatpush.bf16.msra.mxu0 %v868
        %919 = vmatpush.bf16.msra.mxu0 %v866
        %920 = vmatpush.bf16.msra.mxu0 %v864
        %921 = vmatpush.bf16.msra.mxu0 %v862
        %922 = vmatpush.bf16.msra.mxu0 %v860
        %923 = vmatpush.bf16.msra.mxu0 %v858
        %924 = vmatpush.bf16.msra.mxu0 %v856
        %925 = vmatpush.bf16.msra.mxu0 %v854
        %926 = vmatmul.bf16.gmra.mxu0 %v712
        %v927 = vpop.f32.mrf.mxu0
        %v928 = vadd.f32 %v754, %v927
        %v929 = vpop.f32.mrf.mxu0
        %v930 = vadd.f32 %v754, %v929
        %931 = vmatmul.bf16.gmra.mxu0 %v714
        %v932 = vpop.f32.mrf.mxu0
        %v933 = vadd.f32 %v754, %v932
        %v934 = vpop.f32.mrf.mxu0
        %v935 = vadd.f32 %v754, %v934
        %936 = vmatmul.bf16.gmra.mxu0 %v716
        %v937 = vpop.f32.mrf.mxu0
        %v938 = vadd.f32 %v754, %v937
        %v939 = vpop.f32.mrf.mxu0
        %v940 = vadd.f32 %v754, %v939
        %941 = vmatmul.bf16.gmra.mxu0 %v718
        %v942 = vpop.f32.mrf.mxu0
        %v943 = vadd.f32 %v754, %v942
        %v944 = vpop.f32.mrf.mxu0
        %v945 = vadd.f32 %v754, %v944
        %946 = vdwg.mxu0
        %947 = vmatpush.bf16.msra.mxu0 %v884
        %948 = vmatpush.bf16.msra.mxu0 %v882
        %949 = vmatpush.bf16.msra.mxu0 %v880
        %950 = vmatpush.bf16.msra.mxu0 %v878
        %951 = vmatpush.bf16.msra.mxu0 %v876
        %952 = vmatpush.bf16.msra.mxu0 %v874
        %953 = vmatpush.bf16.msra.mxu0 %v872
        %954 = vmatpush.bf16.msra.mxu0 %v870
        %955 = vmatmul.bf16.gmra.mxu0 %v713
        %v956 = vpop.f32.mrf.mxu0
        %v957 = vadd.f32 %v928, %v956
        %v958 = vpop.f32.mrf.mxu0
        %v959 = vadd.f32 %v930, %v958
        %960 = vmatmul.bf16.gmra.mxu0 %v715
        %v961 = vpop.f32.mrf.mxu0
        %v962 = vadd.f32 %v933, %v961
        %v963 = vpop.f32.mrf.mxu0
        %v964 = vadd.f32 %v935, %v963
        %965 = vmatmul.bf16.gmra.mxu0 %v717
        %v966 = vpop.f32.mrf.mxu0
        %v967 = vadd.f32 %v938, %v966
        %v968 = vpop.f32.mrf.mxu0
        %v969 = vadd.f32 %v940, %v968
        %970 = vmatmul.bf16.gmra.mxu0 %v719
        %v971 = vpop.f32.mrf.mxu0
        %v972 = vadd.f32 %v943, %v971
        %v973 = vpop.f32.mrf.mxu0
        %v974 = vadd.f32 %v945, %v973
        %975 = vdwg.mxu0
        %976 = vmatpush.bf16.msra.mxu0 %v869
        %977 = vmatpush.bf16.msra.mxu0 %v867
        %978 = vmatpush.bf16.msra.mxu0 %v865
        %979 = vmatpush.bf16.msra.mxu0 %v863
        %980 = vmatpush.bf16.msra.mxu0 %v861
        %981 = vmatpush.bf16.msra.mxu0 %v859
        %982 = vmatpush.bf16.msra.mxu0 %v857
        %983 = vmatpush.bf16.msra.mxu0 %v855
        %984 = vmatmul.bf16.gmra.mxu0 %v712
        %v985 = vpop.f32.mrf.mxu0
        %v986 = vadd.f32 %v755, %v985
        %v987 = vpop.f32.mrf.mxu0
        %v988 = vadd.f32 %v755, %v987
        %989 = vmatmul.bf16.gmra.mxu0 %v714
        %v990 = vpop.f32.mrf.mxu0
        %v991 = vadd.f32 %v755, %v990
        %v992 = vpop.f32.mrf.mxu0
        %v993 = vadd.f32 %v755, %v992
        %994 = vmatmul.bf16.gmra.mxu0 %v716
        %v995 = vpop.f32.mrf.mxu0
        %v996 = vadd.f32 %v755, %v995
        %v997 = vpop.f32.mrf.mxu0
        %v998 = vadd.f32 %v755, %v997
        %999 = vmatmul.bf16.gmra.mxu0 %v718
        %v1000 = vpop.f32.mrf.mxu0
        %v1001 = vadd.f32 %v755, %v1000
        %v1002 = vpop.f32.mrf.mxu0
        %v1003 = vadd.f32 %v755, %v1002
        %1004 = vdwg.mxu0
        %1005 = vmatpush.bf16.msra.mxu0 %v885
        %1006 = vmatpush.bf16.msra.mxu0 %v883
        %1007 = vmatpush.bf16.msra.mxu0 %v881
        %1008 = vmatpush.bf16.msra.mxu0 %v879
        %1009 = vmatpush.bf16.msra.mxu0 %v877
        %1010 = vmatpush.bf16.msra.mxu0 %v875
        %1011 = vmatpush.bf16.msra.mxu0 %v873
        %1012 = vmatpush.bf16.msra.mxu0 %v871
        %1013 = vmatmul.bf16.gmra.mxu0 %v713
        %v1014 = vpop.f32.mrf.mxu0
        %v1015 = vadd.f32 %v986, %v1014
        %v1016 = vpop.f32.mrf.mxu0
        %v1017 = vadd.f32 %v988, %v1016
        %1018 = vmatmul.bf16.gmra.mxu0 %v715
        %v1019 = vpop.f32.mrf.mxu0
        %v1020 = vadd.f32 %v991, %v1019
        %v1021 = vpop.f32.mrf.mxu0
        %v1022 = vadd.f32 %v993, %v1021
        %1023 = vmatmul.bf16.gmra.mxu0 %v717
        %v1024 = vpop.f32.mrf.mxu0
        %v1025 = vadd.f32 %v996, %v1024
        %v1026 = vpop.f32.mrf.mxu0
        %v1027 = vadd.f32 %v998, %v1026
        %1028 = vmatmul.bf16.gmra.mxu0 %v719
        %v1029 = vpop.f32.mrf.mxu0
        %v1030 = vadd.f32 %v1001, %v1029
        %v1031 = vpop.f32.mrf.mxu0
        %v1032 = vadd.f32 %v1003, %v1031
        %1033 = vdwg.mxu0
        %s1034 = sld [smem:[#allocation2 + $0x1]]
        %vm1035 = vcmp.ge.f32.partialorder %v957, 0.0
        %vm1036 = vcmp.ge.f32.partialorder %v1015, 0.0
        %vm1037 = vcmp.ge.f32.partialorder %v959, 0.0
        %vm1038 = vcmp.ge.f32.partialorder %v1017, 0.0
        %vm1039 = vcmp.ge.f32.partialorder %v962, 0.0
        %vm1040 = vcmp.ge.f32.partialorder %v1020, 0.0
        %vm1041 = vcmp.ge.f32.partialorder %v964, 0.0
        %vm1042 = vcmp.ge.f32.partialorder %v1022, 0.0
        %vm1043 = vcmp.ge.f32.partialorder %v967, 0.0
        %vm1044 = vcmp.ge.f32.partialorder %v1025, 0.0
        %vm1045 = vcmp.ge.f32.partialorder %v969, 0.0
        %vm1046 = vcmp.ge.f32.partialorder %v1027, 0.0
        %vm1047 = vcmp.ge.f32.partialorder %v972, 0.0
        %vm1048 = vcmp.ge.f32.partialorder %v1030, 0.0
        %vm1049 = vcmp.ge.f32.partialorder %v974, 0.0
        %vm1050 = vcmp.ge.f32.partialorder %v1032, 0.0
        %v1051 = vstv %s1034
        %v1052 = vmul.f32 %v1051, %v957
        %v1053 = vmul.f32 %v1051, %v1015
        %v1054 = vmul.f32 %v1051, %v959
        %v1055 = vmul.f32 %v1051, %v1017
        %v1056 = vmul.f32 %v1051, %v962
        %v1057 = vmul.f32 %v1051, %v1020
        %v1058 = vmul.f32 %v1051, %v964
        %v1059 = vmul.f32 %v1051, %v1022
        %v1060 = vmul.f32 %v1051, %v967
        %v1061 = vmul.f32 %v1051, %v1025
        %v1062 = vmul.f32 %v1051, %v969
        %v1063 = vmul.f32 %v1051, %v1027
        %v1064 = vmul.f32 %v1051, %v972
        %v1065 = vmul.f32 %v1051, %v1030
        %v1066 = vmul.f32 %v1051, %v974
        %v1067 = vmul.f32 %v1051, %v1032
        %v1068 = vsel %vm1035, %v957, %v1052
        %v1069 = vsel %vm1036, %v1015, %v1053
        %v1070 = vsel %vm1037, %v959, %v1054
        %v1071 = vsel %vm1038, %v1017, %v1055
        %v1072 = vsel %vm1039, %v962, %v1056
        %v1073 = vsel %vm1040, %v1020, %v1057
        %v1074 = vsel %vm1041, %v964, %v1058
        %v1075 = vsel %vm1042, %v1022, %v1059
        %v1076 = vsel %vm1043, %v967, %v1060
        %v1077 = vsel %vm1044, %v1025, %v1061
        %v1078 = vsel %vm1045, %v969, %v1062
        %v1079 = vsel %vm1046, %v1027, %v1063
        %v1080 = vsel %vm1047, %v972, %v1064
        %v1081 = vsel %vm1048, %v1030, %v1065
        %v1082 = vsel %vm1049, %v974, %v1066
        %v1083 = vsel %vm1050, %v1032, %v1067
        %v1084 = vpack.c.bf16 %v1070, %v1068
        %v1085 = vpack.c.bf16 %v1071, %v1069
        %v1086 = vpack.c.bf16 %v1074, %v1072
        %v1087 = vpack.c.bf16 %v1075, %v1073
        %v1088 = vpack.c.bf16 %v1078, %v1076
        %v1089 = vpack.c.bf16 %v1079, %v1077
        %v1090 = vpack.c.bf16 %v1082, %v1080
        %v1091 = vpack.c.bf16 %v1083, %v1081
        %v1092 = vld [vmem:[%s6] sm:$0xff]
        %v1093 = vld [vmem:[%s6 + $0x8] sm:$0xff]
        %v1094 = vld [vmem:[%s6 + $0x10] sm:$0xff]
        %v1095 = vld [vmem:[%s6 + $0x18] sm:$0xff]
        %v1096 = vld [vmem:[%s6 + $0x20] sm:$0xff]
        %v1097 = vld [vmem:[%s6 + $0x28] sm:$0xff]
        %v1098 = vld [vmem:[%s6 + $0x30] sm:$0xff]
        %v1099 = vld [vmem:[%s6 + $0x38] sm:$0xff]
        %v1100 = vld [vmem:[%s6 + $0x40] sm:$0xff]
        %v1101 = vld [vmem:[%s6 + $0x48] sm:$0xff]
        %v1102 = vld [vmem:[%s6 + $0x50] sm:$0xff]
        %v1103 = vld [vmem:[%s6 + $0x58] sm:$0xff]
        %v1104 = vld [vmem:[%s6 + $0x60] sm:$0xff]
        %v1105 = vld [vmem:[%s6 + $0x68] sm:$0xff]
        %v1106 = vld [vmem:[%s6 + $0x70] sm:$0xff]
        %v1107 = vld [vmem:[%s6 + $0x78] sm:$0xff]
        %v1108 = vld [vmem:[%s6 + $0x80] sm:$0xff]
        %v1109 = vld [vmem:[%s6 + $0x88] sm:$0xff]
        %v1110 = vld [vmem:[%s6 + $0x90] sm:$0xff]
        %v1111 = vld [vmem:[%s6 + $0x98] sm:$0xff]
        %v1112 = vld [vmem:[%s6 + $0xa0] sm:$0xff]
        %v1113 = vld [vmem:[%s6 + $0xa8] sm:$0xff]
        %v1114 = vld [vmem:[%s6 + $0xb0] sm:$0xff]
        %v1115 = vld [vmem:[%s6 + $0xb8] sm:$0xff]
        %v1116 = vld [vmem:[%s6 + $0xc0] sm:$0xff]
        %v1117 = vld [vmem:[%s6 + $0xc8] sm:$0xff]
        %v1118 = vld [vmem:[%s6 + $0xd0] sm:$0xff]
        %v1119 = vld [vmem:[%s6 + $0xd8] sm:$0xff]
        %v1120 = vld [vmem:[%s6 + $0xe0] sm:$0xff]
        %v1121 = vld [vmem:[%s6 + $0xe8] sm:$0xff]
        %v1122 = vld [vmem:[%s6 + $0xf0] sm:$0xff]
        %v1123 = vld [vmem:[%s6 + $0xf8] sm:$0xff]
        %v1124 = vld [vmem:[%s7] sm:$0x3]
        %v1126 = vperm.slane %v1124, 0
        %v1127 = vperm.slane %v1124, 1
        %v1162 = vunpack.c.l.b16 %v1092
        %v1163 = vunpack.c.h.b16 %v1092
        %v1164 = vunpack.c.l.b16 %v1093
        %v1165 = vunpack.c.h.b16 %v1093
        %v1166 = vunpack.c.l.b16 %v1094
        %v1167 = vunpack.c.h.b16 %v1094
        %v1168 = vunpack.c.l.b16 %v1095
        %v1169 = vunpack.c.h.b16 %v1095
        %v1170 = vunpack.c.l.b16 %v1096
        %v1171 = vunpack.c.h.b16 %v1096
        %v1172 = vunpack.c.l.b16 %v1097
        %v1173 = vunpack.c.h.b16 %v1097
        %v1174 = vunpack.c.l.b16 %v1098
        %v1175 = vunpack.c.h.b16 %v1098
        %v1176 = vunpack.c.l.b16 %v1099
        %v1177 = vunpack.c.h.b16 %v1099
        %v1178 = vunpack.c.l.b16 %v1100
        %v1179 = vunpack.c.h.b16 %v1100
        %v1180 = vunpack.c.l.b16 %v1101
        %v1181 = vunpack.c.h.b16 %v1101
        %v1182 = vunpack.c.l.b16 %v1102
        %v1183 = vunpack.c.h.b16 %v1102
        %v1184 = vunpack.c.l.b16 %v1103
        %v1185 = vunpack.c.h.b16 %v1103
        %v1186 = vunpack.c.l.b16 %v1104
        %v1187 = vunpack.c.h.b16 %v1104
        %v1188 = vunpack.c.l.b16 %v1105
        %v1189 = vunpack.c.h.b16 %v1105
        %v1190 = vunpack.c.l.b16 %v1106
        %v1191 = vunpack.c.h.b16 %v1106
        %v1192 = vunpack.c.l.b16 %v1107
        %v1193 = vunpack.c.h.b16 %v1107
        %v1194 = vunpack.c.l.b16 %v1108
        %v1195 = vunpack.c.h.b16 %v1108
        %v1196 = vunpack.c.l.b16 %v1109
        %v1197 = vunpack.c.h.b16 %v1109
        %v1198 = vunpack.c.l.b16 %v1110
        %v1199 = vunpack.c.h.b16 %v1110
        %v1200 = vunpack.c.l.b16 %v1111
        %v1201 = vunpack.c.h.b16 %v1111
        %v1202 = vunpack.c.l.b16 %v1112
        %v1203 = vunpack.c.h.b16 %v1112
        %v1204 = vunpack.c.l.b16 %v1113
        %v1205 = vunpack.c.h.b16 %v1113
        %v1206 = vunpack.c.l.b16 %v1114
        %v1207 = vunpack.c.h.b16 %v1114
        %v1208 = vunpack.c.l.b16 %v1115
        %v1209 = vunpack.c.h.b16 %v1115
        %v1210 = vunpack.c.l.b16 %v1116
        %v1211 = vunpack.c.h.b16 %v1116
        %v1212 = vunpack.c.l.b16 %v1117
        %v1213 = vunpack.c.h.b16 %v1117
        %v1214 = vunpack.c.l.b16 %v1118
        %v1215 = vunpack.c.h.b16 %v1118
        %v1216 = vunpack.c.l.b16 %v1119
        %v1217 = vunpack.c.h.b16 %v1119
        %v1218 = vunpack.c.l.b16 %v1120
        %v1219 = vunpack.c.h.b16 %v1120
        %v1220 = vunpack.c.l.b16 %v1121
        %v1221 = vunpack.c.h.b16 %v1121
        %v1222 = vunpack.c.l.b16 %v1122
        %v1223 = vunpack.c.h.b16 %v1122
        %v1224 = vunpack.c.l.b16 %v1123
        %v1225 = vunpack.c.h.b16 %v1123
        %v1226 = vpack.c.b16 %v1164, %v1162
        %v1227 = vpack.c.b16 %v1165, %v1163
        %v1228 = vpack.c.b16 %v1168, %v1166
        %v1229 = vpack.c.b16 %v1169, %v1167
        %v1230 = vpack.c.b16 %v1172, %v1170
        %v1231 = vpack.c.b16 %v1173, %v1171
        %v1232 = vpack.c.b16 %v1176, %v1174
        %v1233 = vpack.c.b16 %v1177, %v1175
        %v1234 = vpack.c.b16 %v1180, %v1178
        %v1235 = vpack.c.b16 %v1181, %v1179
        %v1236 = vpack.c.b16 %v1184, %v1182
        %v1237 = vpack.c.b16 %v1185, %v1183
        %v1238 = vpack.c.b16 %v1188, %v1186
        %v1239 = vpack.c.b16 %v1189, %v1187
        %v1240 = vpack.c.b16 %v1192, %v1190
        %v1241 = vpack.c.b16 %v1193, %v1191
        %v1242 = vpack.c.b16 %v1196, %v1194
        %v1243 = vpack.c.b16 %v1197, %v1195
        %v1244 = vpack.c.b16 %v1200, %v1198
        %v1245 = vpack.c.b16 %v1201, %v1199
        %v1246 = vpack.c.b16 %v1204, %v1202
        %v1247 = vpack.c.b16 %v1205, %v1203
        %v1248 = vpack.c.b16 %v1208, %v1206
        %v1249 = vpack.c.b16 %v1209, %v1207
        %v1250 = vpack.c.b16 %v1212, %v1210
        %v1251 = vpack.c.b16 %v1213, %v1211
        %v1252 = vpack.c.b16 %v1216, %v1214
        %v1253 = vpack.c.b16 %v1217, %v1215
        %v1254 = vpack.c.b16 %v1220, %v1218
        %v1255 = vpack.c.b16 %v1221, %v1219
        %v1256 = vpack.c.b16 %v1224, %v1222
        %v1257 = vpack.c.b16 %v1225, %v1223
        %1290 = vmatpush.bf16.msra.mxu0 %v1240
        %1291 = vmatpush.bf16.msra.mxu0 %v1238
        %1292 = vmatpush.bf16.msra.mxu0 %v1236
        %1293 = vmatpush.bf16.msra.mxu0 %v1234
        %1294 = vmatpush.bf16.msra.mxu0 %v1232
        %1295 = vmatpush.bf16.msra.mxu0 %v1230
        %1296 = vmatpush.bf16.msra.mxu0 %v1228
        %1297 = vmatpush.bf16.msra.mxu0 %v1226
        %1298 = vmatmul.bf16.gmra.mxu0 %v1084
        %v1299 = vpop.f32.mrf.mxu0
        %v1300 = vadd.f32 %v1126, %v1299
        %v1301 = vpop.f32.mrf.mxu0
        %v1302 = vadd.f32 %v1126, %v1301
        %1303 = vmatmul.bf16.gmra.mxu0 %v1086
        %v1304 = vpop.f32.mrf.mxu0
        %v1305 = vadd.f32 %v1126, %v1304
        %v1306 = vpop.f32.mrf.mxu0
        %v1307 = vadd.f32 %v1126, %v1306
        %1308 = vmatmul.bf16.gmra.mxu0 %v1088
        %v1309 = vpop.f32.mrf.mxu0
        %v1310 = vadd.f32 %v1126, %v1309
        %v1311 = vpop.f32.mrf.mxu0
        %v1312 = vadd.f32 %v1126, %v1311
        %1313 = vmatmul.bf16.gmra.mxu0 %v1090
        %v1314 = vpop.f32.mrf.mxu0
        %v1315 = vadd.f32 %v1126, %v1314
        %v1316 = vpop.f32.mrf.mxu0
        %v1317 = vadd.f32 %v1126, %v1316
        %1318 = vdwg.mxu0
        %1319 = vmatpush.bf16.msra.mxu0 %v1256
        %1320 = vmatpush.bf16.msra.mxu0 %v1254
        %1321 = vmatpush.bf16.msra.mxu0 %v1252
        %1322 = vmatpush.bf16.msra.mxu0 %v1250
        %1323 = vmatpush.bf16.msra.mxu0 %v1248
        %1324 = vmatpush.bf16.msra.mxu0 %v1246
        %1325 = vmatpush.bf16.msra.mxu0 %v1244
        %1326 = vmatpush.bf16.msra.mxu0 %v1242
        %1327 = vmatmul.bf16.gmra.mxu0 %v1085
        %v1328 = vpop.f32.mrf.mxu0
        %v1329 = vadd.f32 %v1300, %v1328
        %v1330 = vpop.f32.mrf.mxu0
        %v1331 = vadd.f32 %v1302, %v1330
        %1332 = vmatmul.bf16.gmra.mxu0 %v1087
        %v1333 = vpop.f32.mrf.mxu0
        %v1334 = vadd.f32 %v1305, %v1333
        %v1335 = vpop.f32.mrf.mxu0
        %v1336 = vadd.f32 %v1307, %v1335
        %1337 = vmatmul.bf16.gmra.mxu0 %v1089
        %v1338 = vpop.f32.mrf.mxu0
        %v1339 = vadd.f32 %v1310, %v1338
        %v1340 = vpop.f32.mrf.mxu0
        %v1341 = vadd.f32 %v1312, %v1340
        %1342 = vmatmul.bf16.gmra.mxu0 %v1091
        %v1343 = vpop.f32.mrf.mxu0
        %v1344 = vadd.f32 %v1315, %v1343
        %v1345 = vpop.f32.mrf.mxu0
        %v1346 = vadd.f32 %v1317, %v1345
        %1347 = vdwg.mxu0
        %1348 = vmatpush.bf16.msra.mxu0 %v1241
        %1349 = vmatpush.bf16.msra.mxu0 %v1239
        %1350 = vmatpush.bf16.msra.mxu0 %v1237
        %1351 = vmatpush.bf16.msra.mxu0 %v1235
        %1352 = vmatpush.bf16.msra.mxu0 %v1233
        %1353 = vmatpush.bf16.msra.mxu0 %v1231
        %1354 = vmatpush.bf16.msra.mxu0 %v1229
        %1355 = vmatpush.bf16.msra.mxu0 %v1227
        %1356 = vmatmul.bf16.gmra.mxu0 %v1084
        %v1357 = vpop.f32.mrf.mxu0
        %v1358 = vadd.f32 %v1127, %v1357
        %v1359 = vpop.f32.mrf.mxu0
        %v1360 = vadd.f32 %v1127, %v1359
        %1361 = vmatmul.bf16.gmra.mxu0 %v1086
        %v1362 = vpop.f32.mrf.mxu0
        %v1363 = vadd.f32 %v1127, %v1362
        %v1364 = vpop.f32.mrf.mxu0
        %v1365 = vadd.f32 %v1127, %v1364
        %1366 = vmatmul.bf16.gmra.mxu0 %v1088
        %v1367 = vpop.f32.mrf.mxu0
        %v1368 = vadd.f32 %v1127, %v1367
        %v1369 = vpop.f32.mrf.mxu0
        %v1370 = vadd.f32 %v1127, %v1369
        %1371 = vmatmul.bf16.gmra.mxu0 %v1090
        %v1372 = vpop.f32.mrf.mxu0
        %v1373 = vadd.f32 %v1127, %v1372
        %v1374 = vpop.f32.mrf.mxu0
        %v1375 = vadd.f32 %v1127, %v1374
        %1376 = vdwg.mxu0
        %1377 = vmatpush.bf16.msra.mxu0 %v1257
        %1378 = vmatpush.bf16.msra.mxu0 %v1255
        %1379 = vmatpush.bf16.msra.mxu0 %v1253
        %1380 = vmatpush.bf16.msra.mxu0 %v1251
        %1381 = vmatpush.bf16.msra.mxu0 %v1249
        %1382 = vmatpush.bf16.msra.mxu0 %v1247
        %1383 = vmatpush.bf16.msra.mxu0 %v1245
        %1384 = vmatpush.bf16.msra.mxu0 %v1243
        %1385 = vmatmul.bf16.gmra.mxu0 %v1085
        %v1386 = vpop.f32.mrf.mxu0
        %v1387 = vadd.f32 %v1358, %v1386
        %v1388 = vpop.f32.mrf.mxu0
        %v1389 = vadd.f32 %v1360, %v1388
        %1390 = vmatmul.bf16.gmra.mxu0 %v1087
        %v1391 = vpop.f32.mrf.mxu0
        %v1392 = vadd.f32 %v1363, %v1391
        %v1393 = vpop.f32.mrf.mxu0
        %v1394 = vadd.f32 %v1365, %v1393
        %1395 = vmatmul.bf16.gmra.mxu0 %v1089
        %v1396 = vpop.f32.mrf.mxu0
        %v1397 = vadd.f32 %v1368, %v1396
        %v1398 = vpop.f32.mrf.mxu0
        %v1399 = vadd.f32 %v1370, %v1398
        %1400 = vmatmul.bf16.gmra.mxu0 %v1091
        %v1401 = vpop.f32.mrf.mxu0
        %v1402 = vadd.f32 %v1373, %v1401
        %v1403 = vpop.f32.mrf.mxu0
        %v1404 = vadd.f32 %v1375, %v1403
        %1405 = vdwg.mxu0
        %s1406 = sld [smem:[#allocation2 + $0x2]]
        %vm1407 = vcmp.ge.f32.partialorder %v1329, 0.0
        %vm1408 = vcmp.ge.f32.partialorder %v1387, 0.0
        %vm1409 = vcmp.ge.f32.partialorder %v1331, 0.0
        %vm1410 = vcmp.ge.f32.partialorder %v1389, 0.0
        %vm1411 = vcmp.ge.f32.partialorder %v1334, 0.0
        %vm1412 = vcmp.ge.f32.partialorder %v1392, 0.0
        %vm1413 = vcmp.ge.f32.partialorder %v1336, 0.0
        %vm1414 = vcmp.ge.f32.partialorder %v1394, 0.0
        %vm1415 = vcmp.ge.f32.partialorder %v1339, 0.0
        %vm1416 = vcmp.ge.f32.partialorder %v1397, 0.0
        %vm1417 = vcmp.ge.f32.partialorder %v1341, 0.0
        %vm1418 = vcmp.ge.f32.partialorder %v1399, 0.0
        %vm1419 = vcmp.ge.f32.partialorder %v1344, 0.0
        %vm1420 = vcmp.ge.f32.partialorder %v1402, 0.0
        %vm1421 = vcmp.ge.f32.partialorder %v1346, 0.0
        %vm1422 = vcmp.ge.f32.partialorder %v1404, 0.0
        %v1423 = vstv %s1406
        %v1424 = vmul.f32 %v1423, %v1329
        %v1425 = vmul.f32 %v1423, %v1387
        %v1426 = vmul.f32 %v1423, %v1331
        %v1427 = vmul.f32 %v1423, %v1389
        %v1428 = vmul.f32 %v1423, %v1334
        %v1429 = vmul.f32 %v1423, %v1392
        %v1430 = vmul.f32 %v1423, %v1336
        %v1431 = vmul.f32 %v1423, %v1394
        %v1432 = vmul.f32 %v1423, %v1339
        %v1433 = vmul.f32 %v1423, %v1397
        %v1434 = vmul.f32 %v1423, %v1341
        %v1435 = vmul.f32 %v1423, %v1399
        %v1436 = vmul.f32 %v1423, %v1344
        %v1437 = vmul.f32 %v1423, %v1402
        %v1438 = vmul.f32 %v1423, %v1346
        %v1439 = vmul.f32 %v1423, %v1404
        %v1440 = vsel %vm1407, %v1329, %v1424
        %v1441 = vsel %vm1408, %v1387, %v1425
        %v1442 = vsel %vm1409, %v1331, %v1426
        %v1443 = vsel %vm1410, %v1389, %v1427
        %v1444 = vsel %vm1411, %v1334, %v1428
        %v1445 = vsel %vm1412, %v1392, %v1429
        %v1446 = vsel %vm1413, %v1336, %v1430
        %v1447 = vsel %vm1414, %v1394, %v1431
        %v1448 = vsel %vm1415, %v1339, %v1432
        %v1449 = vsel %vm1416, %v1397, %v1433
        %v1450 = vsel %vm1417, %v1341, %v1434
        %v1451 = vsel %vm1418, %v1399, %v1435
        %v1452 = vsel %vm1419, %v1344, %v1436
        %v1453 = vsel %vm1420, %v1402, %v1437
        %v1454 = vsel %vm1421, %v1346, %v1438
        %v1455 = vsel %vm1422, %v1404, %v1439
        %1456 = vst [vmem:[%s315] sm:$0xff] %v1440
        %1457 = vst [vmem:[%s315 + $0x8] sm:$0xff] %v1441
        %1458 = vst [vmem:[%s315 + $0x10] sm:$0xff] %v1442
        %1459 = vst [vmem:[%s315 + $0x18] sm:$0xff] %v1443
        %1460 = vst [vmem:[%s315 + $0x20] sm:$0xff] %v1444
        %1461 = vst [vmem:[%s315 + $0x28] sm:$0xff] %v1445
        %1462 = vst [vmem:[%s315 + $0x30] sm:$0xff] %v1446
        %1463 = vst [vmem:[%s315 + $0x38] sm:$0xff] %v1447
        %1464 = vst [vmem:[%s315 + $0x40] sm:$0xff] %v1448
        %1465 = vst [vmem:[%s315 + $0x48] sm:$0xff] %v1449
        %1466 = vst [vmem:[%s315 + $0x50] sm:$0xff] %v1450
        %1467 = vst [vmem:[%s315 + $0x58] sm:$0xff] %v1451
        %1468 = vst [vmem:[%s315 + $0x60] sm:$0xff] %v1452
        %1469 = vst [vmem:[%s315 + $0x68] sm:$0xff] %v1453
        %1470 = vst [vmem:[%s315 + $0x70] sm:$0xff] %v1454
        %1471 = vst [vmem:[%s315 + $0x78] sm:$0xff] %v1455
        %s1472 = sand.u32 %s204, 1
        %s1473 = scalar_lea.sflag [#allocation3], %s1472
        %s1474 = sand.u32 %s204, 1
        %s1475 = smul.addr %s1474, 128
        %s1476 = scalar_lea.vmem [#allocation5], %s1475
        // Predicated region
        $region57: #{preprocess_forward.1} parent=51 // pred_check
          %p1477 = pneg %p214
        $region58: #{preprocess_forward.1} parent=51 // pred_check_branch
          %1479 = sbr.rel (%p1477) target = $region60
        $region59: #{preprocess_forward.1} parent=51 // pred_region
          %s1480 = smul.u32 8, %s23
          %1482 = vsyncadd %s1473, 0
          %s1483 = smul.addr %s1480, 2
          %s1484 = smul.addr %s1483, 8
          %s1485 = scalar_lea.hbm %s8, %s1484
          %s1486 = sshll.u32 %s1476, 4
          %s1487 = int_to_ptr.vmem [resolvable:$true] %s1486
          %s1488 = sshll.u32 %s1485, 4
          %s1489 = int_to_ptr.hbm [resolvable:$true] %s1488
          %1494 = dma.vmem_to_hbm [thread:$0]  %s1487, 2048, %s1489, %s1473, 256, 256, 16
        $region60: #{preprocess_forward.1} parent=51 // pred_fallthru
          _
      $region52: #{preprocess_forward.1} parent=5 // pred_fallthru
        _
      %p1495 = scmp.le.s32.totalorder 2, %s18
      // Predicated region
      $region61: #{preprocess_forward.1} parent=5 // pred_check
        %p1496 = pneg %p1495
      $region62: #{preprocess_forward.1} parent=5 // pred_check_branch
        %1498 = sbr.rel (%p1496) target = $region64
      $region63: #{preprocess_forward.1} parent=5 // pred_region
        %s1499 = ssub.s32 %s18, 2
        // Predicated region
        $region65: #{preprocess_forward.1} parent=63 // pred_check
          %p1500 = pneg %p220
        $region66: #{preprocess_forward.1} parent=63 // pred_check_branch
          %1502 = sbr.rel (%p1500) target = $region68
        $region67: #{preprocess_forward.1} parent=63 // pred_region
          %s1503 = sand.u32 %s205, 1
          %s1504 = scalar_lea.sflag [#allocation3], %s1503
          %s1505 = sand.u32 %s205, 1
          %s1506 = smul.addr %s1505, 128
          %s1507 = scalar_lea.vmem [#allocation5], %s1506
          %1509 = dma.done %s1504, 2048
        $region68: #{preprocess_forward.1} parent=63 // pred_fallthru
          _
      $region64: #{preprocess_forward.1} parent=5 // pred_fallthru
        _
    $region6: #{preprocess_forward.1} parent=1 // loop_footer
      %s22 = sadd.s32 1, %s18
    $region7: #{preprocess_forward.1} parent=1 // loop_footer_branch
      %17 = sbr.rel target = $region3
    $region8: #{preprocess_forward.1} parent=1 // loop_exit
      _
    %1510 = vsyncpa [#allocation3], 1
    %s1511 = scalar_lea.sflag [#allocation3], 1
    %1512 = vsyncpa %s1511, 1
    %1513 = vsyncpa [#allocation4], 1
    %s1514 = scalar_lea.sflag [#allocation4], 1
    %1515 = vsyncpa %s1514, 1

</llo_original>
